<compile_context>
chip_gen: v6e
topology: v6e:2x2x1
jax: 0.10.0
libtpu: 0.0.40
codegen_flags: <defaults>
</compile_context>

<pallas_src>
import math
import functools

import jax
import jax.numpy as jnp
from jax.experimental import pallas as pl
from jax.experimental.pallas import tpu as pltpu


# Scoped-VMEM request: above the 16 MiB (v5e) / 32 MiB (v6e, v7x) defaults so the chosen
# blocks keep double-buffered pipelining, below v7x's 64 MiB physical VMEM.
_VMEM_LIMIT = 48 * 1024 * 1024


def _compiler_params():
    return pltpu.CompilerParams(dimension_semantics=("parallel",),
                                vmem_limit_bytes=_VMEM_LIMIT)


def _pick_g_block(bh, max_g):
    """Largest divisor of bh <= max_g, preferring a grid of >= 2 steps (v7x megacore)."""
    g = min(max_g, bh)
    while bh % g:
        g -= 1
    if g == bh and bh > 1:          # a grid of length 1 wastes a TensorCore on v7x
        g = bh // 2
        while bh % g:
            g -= 1
    return max(g, 1)


# --------------------------------------------------------------------------
# Kernel A: sparsity measurement M (ProbAttention._prob_QK measurement)
#   Per (b,h):   qk_t = K @ Q^T  (full tile, MXU, bf16 in / f32 acc)
#                M[i] = max over sampled keys of qk_t[:, i]
#                       - (replacement-weighted sum over sampled keys) / L_K
#   The sampled-key count matrix cnt_t (L_K, L_Q) is shared across all (b,h) and kept
#   VMEM-resident.  Reductions run along axis 0 so M rows come out lane-dense.
# --------------------------------------------------------------------------
def _m_kernel(q_ref, k_ref, cnt_ref, m_ref, *, g_block, inv_l_k):
    cnt_t = cnt_ref[...]                        # (L_K, L_Q) f32, resident
    sampled = cnt_t > 0.5                       # hoisted out of the g loop

    def body(g, carry):
        qb = q_ref[g]                           # (L_Q, D) bf16
        kb = k_ref[g]                           # (L_K, D) bf16
        qk_t = jax.lax.dot_general(             # (L_K, L_Q), bf16 x bf16 -> f32 acc
            kb, qb, (((1,), (1,)), ((), ())),
            preferred_element_type=jnp.float32)
        m_max = jnp.max(jnp.where(sampled, qk_t, -jnp.inf), axis=0, keepdims=True)
        m_sum = jnp.sum(qk_t * cnt_t, axis=0, keepdims=True)
        m_ref[g] = m_max - m_sum * inv_l_k      # (1, L_Q) lane-dense row
        return carry

    # fori_loop (not a static Python unroll) bounds the live range of the (L_K, L_Q)
    # tile to one (b,h) at a time.
    # TODO(synk): for very long L, stream K over L_K tiles with running masked-max and
    # weighted-sum carried in scratch instead of one full (L_K, L_Q) tile per head.
    jax.lax.fori_loop(0, g_block, body, 0)


def _prob_measure(q, k, cnt_t, l_k, g_block):
    bh, l_q, d = q.shape
    l_kk = k.shape[1]
    m3 = pl.pallas_call(
        functools.partial(_m_kernel, g_block=g_block, inv_l_k=1.0 / l_k),
        out_shape=jax.ShapeDtypeStruct((bh, 1, l_q), jnp.float32),
        grid=(bh // g_block,),
        in_specs=[
            pl.BlockSpec((g_block, l_q, d), lambda i: (i, 0, 0)),
            pl.BlockSpec((g_block, l_kk, d), lambda i: (i, 0, 0)),
            pl.BlockSpec((l_kk, l_q), lambda i: (0, 0)),       # resident across the grid
        ],
        out_specs=pl.BlockSpec((g_block, 1, l_q), lambda i: (i, 0, 0)),
        compiler_params=_compiler_params(),
    )(q, k, cnt_t)
    return m3[:, 0, :]                          # (BH, L_Q)


# --------------------------------------------------------------------------
# Kernel B: sparse attention + context update (mask_flag=True path)
#   Per (b,h):
#     scores = scale * Q_reduce @ K^T               (u, L_K)  bf16 MXU / f32 acc
#     ProbMask: scores[t, j] = -inf where j > index[t]
#     attn = softmax(scores)         (pl.reciprocal, approx)
#     ctx_init = cumsum(V) via resident bf16 tril @ V
#     scatter the u updated rows via one-hot matmul + select
# --------------------------------------------------------------------------
def _sparse_attn_kernel(q_ref, k_ref, v_ref, idxc_ref, idxr_ref, tril_ref, ctx_ref,
                        *, g_block, scale):
    tril = tril_ref[...]                                        # (L, L) bf16 0/1, resident
    l_k = tril.shape[0]
    n_top = idxc_ref.shape[1]
    # Loop-invariant iotas hoisted out of the g loop.
    col = jax.lax.broadcasted_iota(jnp.int32, (n_top, l_k), 1)
    row = jax.lax.broadcasted_iota(jnp.int32, (l_k, n_top), 0)

    def body(g, carry):
        q = q_ref[g]                                            # (u, D) bf16
        k = k_ref[g]                                            # (L, D) bf16
        v = v_ref[g]                                            # (L, D) bf16
        idx_col = idxc_ref[g]                                   # (u, 1) int32
        idx_row = idxr_ref[g]                                   # (1, u) int32

        scores = jax.lax.dot_general(                           # (u, L), f32 accumulation
            q, k, (((1,), (1,)), ((), ())),
            preferred_element_type=jnp.float32) * scale
        scores = jnp.where(col > idx_col, -jnp.inf, scores)     # ProbMask (triu(1) @ index)

        m = jnp.max(scores, axis=-1, keepdims=True)
        e = jnp.exp(scores - m)
        attn = e * pl.reciprocal(jnp.sum(e, axis=-1, keepdims=True), approx=True)

        out = jnp.dot(attn.astype(jnp.bfloat16), v,
                      preferred_element_type=jnp.float32)       # (u, D)

        # Initial context = cumsum(V): resident lower-triangular ones @ V (bf16 MXU path;
        # ~1e-3 relative vs the f32 torch cumsum).
        ctx_init = jnp.dot(tril, v, preferred_element_type=jnp.float32)     # (L, D)

        # Scatter the u updated rows via one-hot matmul + select (top-k indices unique).
        onehot = (row == idx_row).astype(jnp.bfloat16)          # (L, u)
        scatter = jnp.dot(onehot, out.astype(jnp.bfloat16),
                          preferred_element_type=jnp.float32)   # (L, D)
        selected = jnp.max(onehot, axis=-1, keepdims=True) > 0.5             # (L, 1)
        ctx_ref[g] = jnp.where(selected, scatter, ctx_init).astype(ctx_ref.dtype)
        return carry

    jax.lax.fori_loop(0, g_block, body, 0)


def _sparse_attention(q_reduce, k, v, index, tril, scale, g_block):
    bh, n_top, d = q_reduce.shape
    l_k = k.shape[1]
    idx = index.astype(jnp.int32)
    # Two tiny int32 layouts of the same indices (column for the ProbMask, row for the
    # one-hot) so no in-kernel relayout/transpose is needed.
    idx_col = idx[:, :, None]                                   # (BH, u, 1)
    idx_row = idx[:, None, :]                                   # (BH, 1, u)
    return pl.pallas_call(
        functools.partial(_sparse_attn_kernel, g_block=g_block, scale=scale),
        out_shape=jax.ShapeDtypeStruct((bh, l_k, d), jnp.float32),
        grid=(bh // g_block,),
        in_specs=[
            pl.BlockSpec((g_block, n_top, d), lambda i: (i, 0, 0)),
            pl.BlockSpec((g_block, l_k, d), lambda i: (i, 0, 0)),
            pl.BlockSpec((g_block, l_k, d), lambda i: (i, 0, 0)),
            pl.BlockSpec((g_block, n_top, 1), lambda i: (i, 0, 0)),
            pl.BlockSpec((g_block, 1, n_top), lambda i: (i, 0, 0)),
            pl.BlockSpec((l_k, l_k), lambda i: (0, 0)),         # tril resident across grid
        ],
        out_specs=pl.BlockSpec((g_block, l_k, d), lambda i: (i, 0, 0)),
        compiler_params=_compiler_params(),
    )(q_reduce, k, v, idx_col, idx_row, tril)


# --------------------------------------------------------------------------
# ProbAttention.forward (mask_flag=True, factor=5, scale=None, output_attention=False)
# --------------------------------------------------------------------------
def prob_attention_forward(queries, keys, values, attn_mask=None, *,
                           rng_key, factor=5, scale=None):
    del attn_mask  # mask_flag=True builds its own ProbMask (as in the reference)
    B, L_Q, H, D = queries.shape
    _, L_K, _, _ = keys.shape
    assert L_Q == L_K, "mask_flag=True ProbAttention path requires L_Q == L_K"
    bh = B * H

    # TODO(synk): these (B,L,H,D)->(BH,L,D) transposes are XLA HBM copies; removing them
    # needs 4-D BlockSpecs with squeezed B/H dims (sublane-strided DMA) - not done here.
    def to_heads(t):
        # bf16 once in the wrapper: halves kernel DMA and removes per-step in-kernel casts.
        return jnp.transpose(t.astype(jnp.bfloat16), (0, 2, 1, 3)).reshape(bh, -1, D)
    q = to_heads(queries)
    k = to_heads(keys)
    v = to_heads(values)

    U_part = min(factor * int(math.ceil(math.log(L_K))), L_K)
    u = min(factor * int(math.ceil(math.log(L_Q))), L_Q)

    # torch.randint(L_K, (L_Q, sample_k)) equivalent (shared across B, H).
    index_sample = jax.random.randint(rng_key, (L_Q, U_part), 0, L_K)
    # Replacement-sampling count matrix cnt_t[j, i] = #{s : index_sample[i, s] == j},
    # built by scatter-add (no (L_Q, U_part, L_K) one-hot intermediate).
    cols = jnp.broadcast_to(jnp.arange(L_Q)[:, None], index_sample.shape)
    cnt_t = jnp.zeros((L_K, L_Q), jnp.float32).at[index_sample, cols].add(1.0)

    g_a = _pick_g_block(bh, 8)                  # kernel A: amortize per-step overhead
    g_b = _pick_g_block(bh, 4)                  # kernel B: smaller (L x L intermediates)

    M = _prob_measure(q, k, cnt_t, L_K, g_a)                    # (BH, L_Q)
    _, m_top = jax.lax.top_k(M, u)                              # (BH, u) int32
    q_reduce = jnp.take_along_axis(q, m_top[:, :, None], axis=1)    # (BH, u, D) bf16

    sc = scale if scale is not None else 1.0 / math.sqrt(D)
    tril = jnp.tril(jnp.ones((L_K, L_K), jnp.bfloat16))         # exact 0/1, half footprint

    ctx = _sparse_attention(q_reduce, k, v, m_top, tril, sc, g_b)   # (BH, L_Q, D) f32
    ctx = ctx.reshape(B, H, L_Q, D).transpose(0, 2, 1, 3)       # (B, L_Q, H, D)
    return ctx, None  # output_attention=False


# --------------------------------------------------------------------------
# Fused EncoderLayer tail:
#   x = x + new_x ; x = norm1(x) ; y = conv2(relu(conv1(x))) ; out = norm2(x + y)
#   (conv1d kernel_size=1 == per-token dense; dropout = identity in eval forward)
# --------------------------------------------------------------------------
def _ffn_ln_kernel(x_ref, nx_ref, w1_ref, b1_ref, w2_ref, b2_ref,
                   g1_ref, be1_ref, g2_ref, be2_ref, o_ref, *, eps):
    x = x_ref[...] + nx_ref[...]                                # residual 1
    mu = jnp.mean(x, axis=-1, keepdims=True)
    xc = x - mu
    var = jnp.mean(xc * xc, axis=-1, keepdims=True)
    x1 = xc * jax.lax.rsqrt(var + eps) * g1_ref[...] + be1_ref[...]     # norm1

    h = jnp.dot(x1.astype(jnp.bfloat16), w1_ref[...],           # w1 pre-cast bf16, resident
                preferred_element_type=jnp.float32) + b1_ref[...]
    h = jnp.maximum(h, 0.0)                                     # relu
    y = jnp.dot(h.astype(jnp.bfloat16), w2_ref[...],
                preferred_element_type=jnp.float32) + b2_ref[...]

    z = x1 + y                                                  # residual 2
    mu2 = jnp.mean(z, axis=-1, keepdims=True)
    zc = z - mu2
    var2 = jnp.mean(zc * zc, axis=-1, keepdims=True)
    o_ref[...] = zc * jax.lax.rsqrt(var2 + eps) * g2_ref[...] + be2_ref[...]   # norm2


def encoder_layer_forward(params, x, attn_mask=None, *, rng_key, n_heads, factor=5):
    B, L, d_model = x.shape
    H = n_heads
    D = d_model // H
    assert H * D == d_model
    # TODO(synk): the reference takes an arbitrary `attention` module; here it is Informer
    # ProbAttention over a direct H-way head split (no q/k/v/out projections).
    qkv = x.reshape(B, L, H, D)
    new_x, attn = prob_attention_forward(qkv, qkv, qkv, attn_mask,
                                         rng_key=rng_key, factor=factor)
    new_x = new_x.reshape(B, L, d_model)

    # Grid-resident weights pre-cast to bf16 once (half DMA/VMEM, no per-step repacking).
    w1 = params["w1"].astype(jnp.bfloat16)
    w2 = params["w2"].astype(jnp.bfloat16)
    d_ff = w1.shape[1]

    n = B * L
    tm = 512 if n > 512 else n          # fixed tile; Pallas masks the ragged tail block
    out2d = pl.pallas_call(
        functools.partial(_ffn_ln_kernel, eps=1e-5),
        out_shape=jax.ShapeDtypeStruct((n, d_model), jnp.float32),
        grid=(pl.cdiv(n, tm),),
        in_specs=[
            pl.BlockSpec((tm, d_model), lambda i: (i, 0)),
            pl.BlockSpec((tm, d_model), lambda i: (i, 0)),
            pl.BlockSpec((d_model, d_ff), lambda i: (0, 0)),    # weights resident
            pl.BlockSpec((1, d_ff), lambda i: (0, 0)),
            pl.BlockSpec((d_ff, d_model), lambda i: (0, 0)),
            pl.BlockSpec((1, d_model), lambda i: (0, 0)),
            pl.BlockSpec((1, d_model), lambda i: (0, 0)),
            pl.BlockSpec((1, d_model), lambda i: (0, 0)),
            pl.BlockSpec((1, d_model), lambda i: (0, 0)),
            pl.BlockSpec((1, d_model), lambda i: (0, 0)),
        ],
        out_specs=pl.BlockSpec((tm, d_model), lambda i: (i, 0)),
        compiler_params=_compiler_params(),
    )(x.reshape(n, d_model), new_x.reshape(n, d_model),
      w1, params["b1"], w2, params["b2"],
      params["g1"], params["be1"], params["g2"], params["be2"])
    return out2d.reshape(B, L, d_model), attn


def init_encoder_layer_params(key, d_model, d_ff):
    k1, k2, k3, k4 = jax.random.split(key, 4)
    s1 = 1.0 / math.sqrt(d_model)
    s2 = 1.0 / math.sqrt(d_ff)
    return {
        "w1": jax.random.uniform(k1, (d_model, d_ff), jnp.float32, -s1, s1),
        "b1": jax.random.uniform(k2, (1, d_ff), jnp.float32, -s1, s1),
        "w2": jax.random.uniform(k3, (d_ff, d_model), jnp.float32, -s2, s2),
        "b2": jax.random.uniform(k4, (1, d_model), jnp.float32, -s2, s2),
        "g1": jnp.ones((1, d_model), jnp.float32),
        "be1": jnp.zeros((1, d_model), jnp.float32),
        "g2": jnp.ones((1, d_model), jnp.float32),
        "be2": jnp.zeros((1, d_model), jnp.float32),
    }


if __name__ == "__main__":
    key = jax.random.PRNGKey(0)
    kx, kp, ks = jax.random.split(key, 3)

    B, L, H, D = 2, 16, 2, 32          # L_Q = L_K = 16 (mask_flag=True path); d_model = 64
    d_model = H * D
    d_ff = 4 * d_model

    x = jax.random.normal(kx, (B, L, d_model), dtype=jnp.float32)
    params = init_encoder_layer_params(kp, d_model, d_ff)

    fwd = jax.jit(functools.partial(encoder_layer_forward, n_heads=H))
    out, attn = fwd(params, x, rng_key=ks)
    out = jax.block_until_ready(out)

    assert out.shape == (B, L, d_model)
    assert attn is None
    assert bool(jnp.all(jnp.isfinite(out)))
    print("KERNEL_OK")
</pallas_src>

<mosaic_0001>
module attributes {stable_mosaic.version = 11 : i64} {
  func.func private @main(%arg0: i32) attributes {dimension_semantics = [#tpu.dimension_semantics<core_parallel>], iteration_bounds = array<i64: 2>, tpu.core_type = #tpu.core_type<sc_scalar_subcore>, window_params = []} {
    return
  }
}

module attributes {stable_mosaic.version = 11 : i64} {
  func.func private @main(%arg0: i32) attributes {dimension_semantics = [#tpu.dimension_semantics<core_parallel>], iteration_bounds = array<i64: 2>, tpu.core_type = #tpu.core_type<sc_scalar_subcore>, window_params = []} {
    return
  }
}

module attributes {stable_mosaic.version = 11 : i64} {
  func.func @_m_kernel(%arg0: i32, %arg1: memref<2x16x32xbf16, #tpu.memory_space<vmem>>, %arg2: memref<2x16x32xbf16, #tpu.memory_space<vmem>>, %arg3: memref<16x16xf32, #tpu.memory_space<vmem>>, %arg4: memref<2x1x16xf32, #tpu.memory_space<vmem>>) attributes {dimension_semantics = [#tpu.dimension_semantics<parallel>], iteration_bounds = array<i64: 2>, scalar_prefetch = 0 : i64, scratch_operands = 0 : i64, tpu.core_type = #tpu.core_type<tc>, window_params = [{transform_indices = @transform_0, window_bounds = array<i64: 2, 16, 32>}, {transform_indices = @transform_1, window_bounds = array<i64: 2, 16, 32>}, {pipeline_mode = #tpu.pipeline_mode<synchronous>, transform_indices = @transform_2, window_bounds = array<i64: 16, 16>}, {transform_indices = @transform_3, window_bounds = array<i64: 2, 1, 16>}]} {
    %c0 = arith.constant 0 : index
    %c0_0 = arith.constant 0 : index
    %0 = vector.load %arg3[%c0, %c0_0] : memref<16x16xf32, #tpu.memory_space<vmem>>, vector<16x16xf32>
    %cst = arith.constant 5.000000e-01 : f32
    %1 = vector.broadcast %cst : f32 to vector<16x16xf32>
    %2 = arith.cmpf ogt, %0, %1 : vector<16x16xf32>
    %c0_i32 = arith.constant 0 : i32
    %c2_i32 = arith.constant 2 : i32
    %3 = arith.addi %c0_i32, %c2_i32 : i32
    %c1_i32 = arith.constant 1 : i32
    scf.for %arg5 = %c0_i32 to %3 step %c1_i32  : i32 {
      %4 = arith.index_cast %arg5 : i32 to index
      %c0_2 = arith.constant 0 : index
      %c0_3 = arith.constant 0 : index
      %5 = vector.load %arg1[%4, %c0_2, %c0_3] : memref<2x16x32xbf16, #tpu.memory_space<vmem>>, vector<1x16x32xbf16>
      %6 = vector.shape_cast %5 : vector<1x16x32xbf16> to vector<16x32xbf16>
      %7 = arith.index_cast %arg5 : i32 to index
      %c0_4 = arith.constant 0 : index
      %c0_5 = arith.constant 0 : index
      %8 = vector.load %arg2[%7, %c0_4, %c0_5] : memref<2x16x32xbf16, #tpu.memory_space<vmem>>, vector<1x16x32xbf16>
      %9 = vector.shape_cast %8 : vector<1x16x32xbf16> to vector<16x32xbf16>
      %cst_6 = arith.constant dense<0.000000e+00> : vector<16x16xf32>
      %10 = tpu.matmul %9, %6, %cst_6 {dimension_numbers = #tpu.dot_dimension_numbers<[1], [1], [0], [0], [0, 0, 1, 0], [], []>} : vector<16x32xbf16>, vector<16x32xbf16>, vector<16x16xf32> -> vector<16x16xf32>
      %cst_7 = arith.constant 0xFF800000 : f32
      %11 = vector.broadcast %cst_7 : f32 to vector<16x16xf32>
      %12 = arith.select %2, %10, %11 : vector<16x16xi1>, vector<16x16xf32>
      %cst_8 = arith.constant dense<0xFF800000> : vector<16xf32>
      %13 = vector.multi_reduction <maximumf>, %12, %cst_8 [0] : vector<16x16xf32> to vector<16xf32>
      %14 = vector.shape_cast %13 : vector<16xf32> to vector<1x16xf32>
      %15 = arith.mulf %10, %0 : vector<16x16xf32>
      %cst_9 = arith.constant dense<0.000000e+00> : vector<16xf32>
      %16 = vector.multi_reduction <add>, %15, %cst_9 [0] : vector<16x16xf32> to vector<16xf32>
      %17 = vector.shape_cast %16 : vector<16xf32> to vector<1x16xf32>
      %cst_10 = arith.constant 6.250000e-02 : f32
      %18 = vector.broadcast %cst_10 : f32 to vector<1x16xf32>
      %19 = arith.mulf %17, %18 : vector<1x16xf32>
      %20 = arith.subf %14, %19 : vector<1x16xf32>
      %21 = arith.index_cast %arg5 : i32 to index
      %c0_11 = arith.constant 0 : index
      %c0_12 = arith.constant 0 : index
      %22 = vector.load %arg4[%21, %c0_11, %c0_12] : memref<2x1x16xf32, #tpu.memory_space<vmem>>, vector<1x1x16xf32>
      %23 = vector.shape_cast %22 : vector<1x1x16xf32> to vector<1x16xf32>
      %24 = vector.shape_cast %20 : vector<1x16xf32> to vector<1x1x16xf32>
      tpu.vector_store %arg4[%21, %c0_11, %c0_12], %24 {strides = array<i32>} : memref<2x1x16xf32, #tpu.memory_space<vmem>>, vector<1x1x16xf32>,
    }
    %c2_i32_1 = arith.constant 2 : i32
    return
  }
  func.func @transform_0(%arg0: i32) -> (i32, i32, i32) {
    %c0_i32 = arith.constant 0 : i32
    %c0_i32_0 = arith.constant 0 : i32
    %c0_i32_1 = arith.constant 0 : i32
    return %arg0, %c0_i32, %c0_i32_0 : i32, i32, i32
  }
  func.func @transform_1(%arg0: i32) -> (i32, i32, i32) {
    %c0_i32 = arith.constant 0 : i32
    %c0_i32_0 = arith.constant 0 : i32
    %c0_i32_1 = arith.constant 0 : i32
    return %arg0, %c0_i32, %c0_i32_0 : i32, i32, i32
  }
  func.func @transform_2(%arg0: i32) -> (i32, i32) {
    %c0_i32 = arith.constant 0 : i32
    %c0_i32_0 = arith.constant 0 : i32
    %c0_i32_1 = arith.constant 0 : i32
    return %c0_i32, %c0_i32_0 : i32, i32
  }
  func.func @transform_3(%arg0: i32) -> (i32, i32, i32) {
    %c0_i32 = arith.constant 0 : i32
    %c0_i32_0 = arith.constant 0 : i32
    %c0_i32_1 = arith.constant 0 : i32
    return %arg0, %c0_i32, %c0_i32_0 : i32, i32, i32
  }
}

module attributes {stable_mosaic.version = 11 : i64} {
  func.func @_sparse_attn_kernel(%arg0: i32, %arg1: memref<2x15x32xbf16, #tpu.memory_space<vmem>>, %arg2: memref<2x16x32xbf16, #tpu.memory_space<vmem>>, %arg3: memref<2x16x32xbf16, #tpu.memory_space<vmem>>, %arg4: memref<2x15x1xi32, #tpu.memory_space<vmem>>, %arg5: memref<2x1x15xi32, #tpu.memory_space<vmem>>, %arg6: memref<16x16xbf16, #tpu.memory_space<vmem>>, %arg7: memref<2x16x32xf32, #tpu.memory_space<vmem>>) attributes {dimension_semantics = [#tpu.dimension_semantics<parallel>], iteration_bounds = array<i64: 2>, scalar_prefetch = 0 : i64, scratch_operands = 0 : i64, tpu.core_type = #tpu.core_type<tc>, window_params = [{transform_indices = @transform_0, window_bounds = array<i64: 2, 15, 32>}, {transform_indices = @transform_1, window_bounds = array<i64: 2, 16, 32>}, {transform_indices = @transform_2, window_bounds = array<i64: 2, 16, 32>}, {transform_indices = @transform_3, window_bounds = array<i64: 2, 15, 1>}, {transform_indices = @transform_4, window_bounds = array<i64: 2, 1, 15>}, {pipeline_mode = #tpu.pipeline_mode<synchronous>, transform_indices = @transform_5, window_bounds = array<i64: 16, 16>}, {transform_indices = @transform_6, window_bounds = array<i64: 2, 16, 32>}]} {
    %c0 = arith.constant 0 : index
    %c0_0 = arith.constant 0 : index
    %0 = vector.load %arg6[%c0, %c0_0] : memref<16x16xbf16, #tpu.memory_space<vmem>>, vector<16x16xbf16>
    %1 = tpu.iota {dimensions = array<i32: 1>} : vector<15x16xi32>
    %2 = tpu.iota {dimensions = array<i32: 0>} : vector<16x15xi32>
    %c0_i32 = arith.constant 0 : i32
    %c2_i32 = arith.constant 2 : i32
    %3 = arith.addi %c0_i32, %c2_i32 : i32
    %c1_i32 = arith.constant 1 : i32
    scf.for %arg8 = %c0_i32 to %3 step %c1_i32  : i32 {
      %4 = arith.index_cast %arg8 : i32 to index
      %c0_2 = arith.constant 0 : index
      %c0_3 = arith.constant 0 : index
      %5 = vector.load %arg1[%4, %c0_2, %c0_3] : memref<2x15x32xbf16, #tpu.memory_space<vmem>>, vector<1x15x32xbf16>
      %6 = vector.shape_cast %5 : vector<1x15x32xbf16> to vector<15x32xbf16>
      %7 = arith.index_cast %arg8 : i32 to index
      %c0_4 = arith.constant 0 : index
      %c0_5 = arith.constant 0 : index
      %8 = vector.load %arg2[%7, %c0_4, %c0_5] : memref<2x16x32xbf16, #tpu.memory_space<vmem>>, vector<1x16x32xbf16>
      %9 = vector.shape_cast %8 : vector<1x16x32xbf16> to vector<16x32xbf16>
      %10 = arith.index_cast %arg8 : i32 to index
      %c0_6 = arith.constant 0 : index
      %c0_7 = arith.constant 0 : index
      %11 = vector.load %arg3[%10, %c0_6, %c0_7] : memref<2x16x32xbf16, #tpu.memory_space<vmem>>, vector<1x16x32xbf16>
      %12 = vector.shape_cast %11 : vector<1x16x32xbf16> to vector<16x32xbf16>
      %13 = arith.index_cast %arg8 : i32 to index
      %c0_8 = arith.constant 0 : index
      %c0_9 = arith.constant 0 : index
      %14 = vector.load %arg4[%13, %c0_8, %c0_9] : memref<2x15x1xi32, #tpu.memory_space<vmem>>, vector<1x15x1xi32>
      %15 = vector.shape_cast %14 : vector<1x15x1xi32> to vector<15x1xi32>
      %16 = arith.index_cast %arg8 : i32 to index
      %c0_10 = arith.constant 0 : index
      %c0_11 = arith.constant 0 : index
      %17 = vector.load %arg5[%16, %c0_10, %c0_11] : memref<2x1x15xi32, #tpu.memory_space<vmem>>, vector<1x1x15xi32>
      %18 = vector.shape_cast %17 : vector<1x1x15xi32> to vector<1x15xi32>
      %cst = arith.constant dense<0.000000e+00> : vector<15x16xf32>
      %19 = tpu.matmul %6, %9, %cst {dimension_numbers = #tpu.dot_dimension_numbers<[1], [1], [0], [0], [0, 0, 1, 0], [], []>} : vector<15x32xbf16>, vector<16x32xbf16>, vector<15x16xf32> -> vector<15x16xf32>
      %cst_12 = arith.constant 0.176776692 : f32
      %20 = vector.broadcast %cst_12 : f32 to vector<15x16xf32>
      %21 = arith.mulf %19, %20 : vector<15x16xf32>
      %22 = vector.broadcast %15 : vector<15x1xi32> to vector<15x16xi32>
      %23 = arith.cmpi sgt, %1, %22 : vector<15x16xi32>
      %cst_13 = arith.constant 0xFF800000 : f32
      %24 = vector.broadcast %cst_13 : f32 to vector<15x16xf32>
      %25 = arith.select %23, %24, %21 : vector<15x16xi1>, vector<15x16xf32>
      %cst_14 = arith.constant dense<0xFF800000> : vector<15xf32>
      %26 = vector.multi_reduction <maximumf>, %25, %cst_14 [1] : vector<15x16xf32> to vector<15xf32>
      %27 = vector.shape_cast %26 : vector<15xf32> to vector<15x1xf32>
      %28 = vector.broadcast %27 : vector<15x1xf32> to vector<15x16xf32>
      %29 = arith.subf %25, %28 : vector<15x16xf32>
      %30 = math.exp %29 : vector<15x16xf32>
      %cst_15 = arith.constant dense<0.000000e+00> : vector<15xf32>
      %31 = vector.multi_reduction <add>, %30, %cst_15 [1] : vector<15x16xf32> to vector<15xf32>
      %32 = vector.shape_cast %31 : vector<15xf32> to vector<15x1xf32>
      %33 = tpu.reciprocal %32 {approx = true} : vector<15x1xf32> -> vector<15x1xf32>
      %34 = vector.broadcast %33 : vector<15x1xf32> to vector<15x16xf32>
      %35 = arith.mulf %30, %34 : vector<15x16xf32>
      %36 = arith.truncf %35 : vector<15x16xf32> to vector<15x16xbf16>
      %cst_16 = arith.constant dense<0.000000e+00> : vector<15x32xf32>
      %37 = tpu.matmul %36, %12, %cst_16 {dimension_numbers = #tpu.dot_dimension_numbers<[1], [0], [0], [1], [0, 0, 1, 1], [], []>} : vector<15x16xbf16>, vector<16x32xbf16>, vector<15x32xf32> -> vector<15x32xf32>
      %cst_17 = arith.constant dense<0.000000e+00> : vector<16x32xf32>
      %38 = tpu.matmul %0, %12, %cst_17 {dimension_numbers = #tpu.dot_dimension_numbers<[1], [0], [0], [1], [0, 0, 1, 1], [], []>} : vector<16x16xbf16>, vector<16x32xbf16>, vector<16x32xf32> -> vector<16x32xf32>
      %39 = vector.broadcast %18 : vector<1x15xi32> to vector<16x15xi32>
      %40 = arith.cmpi eq, %2, %39 : vector<16x15xi32>
      %41 = arith.extui %40 : vector<16x15xi1> to vector<16x15xi32>
      %42 = arith.sitofp %41 : vector<16x15xi32> to vector<16x15xf32>
      %43 = arith.truncf %42 : vector<16x15xf32> to vector<16x15xbf16>
      %44 = arith.truncf %37 : vector<15x32xf32> to vector<15x32xbf16>
      %cst_18 = arith.constant dense<0.000000e+00> : vector<16x32xf32>
      %45 = tpu.matmul %43, %44, %cst_18 {dimension_numbers = #tpu.dot_dimension_numbers<[1], [0], [0], [1], [0, 0, 1, 1], [], []>} : vector<16x15xbf16>, vector<15x32xbf16>, vector<16x32xf32> -> vector<16x32xf32>
      %cst_19 = arith.constant dense<0xFF80> : vector<16xbf16>
      %46 = vector.multi_reduction <maximumf>, %43, %cst_19 [1] : vector<16x15xbf16> to vector<16xbf16>
      %47 = vector.shape_cast %46 : vector<16xbf16> to vector<16x1xbf16>
      %cst_20 = arith.constant 5.000000e-01 : bf16
      %48 = vector.broadcast %cst_20 : bf16 to vector<16x1xbf16>
      %49 = arith.cmpf ogt, %47, %48 : vector<16x1xbf16>
      %50 = vector.shape_cast %49 : vector<16x1xi1> to vector<16x1xi1>
      %51 = vector.broadcast %50 : vector<16x1xi1> to vector<16x32xi1>
      %52 = arith.select %51, %45, %38 : vector<16x32xi1>, vector<16x32xf32>
      %53 = arith.index_cast %arg8 : i32 to index
      %c0_21 = arith.constant 0 : index
      %c0_22 = arith.constant 0 : index
      %54 = vector.load %arg7[%53, %c0_21, %c0_22] : memref<2x16x32xf32, #tpu.memory_space<vmem>>, vector<1x16x32xf32>
      %55 = vector.shape_cast %54 : vector<1x16x32xf32> to vector<16x32xf32>
      %56 = vector.shape_cast %52 : vector<16x32xf32> to vector<1x16x32xf32>
      tpu.vector_store %arg7[%53, %c0_21, %c0_22], %56 {strides = array<i32>} : memref<2x16x32xf32, #tpu.memory_space<vmem>>, vector<1x16x32xf32>,
    }
    %c2_i32_1 = arith.constant 2 : i32
    return
  }
  func.func @transform_0(%arg0: i32) -> (i32, i32, i32) {
    %c0_i32 = arith.constant 0 : i32
    %c0_i32_0 = arith.constant 0 : i32
    %c0_i32_1 = arith.constant 0 : i32
    return %arg0, %c0_i32, %c0_i32_0 : i32, i32, i32
  }
  func.func @transform_1(%arg0: i32) -> (i32, i32, i32) {
    %c0_i32 = arith.constant 0 : i32
    %c0_i32_0 = arith.constant 0 : i32
    %c0_i32_1 = arith.constant 0 : i32
    return %arg0, %c0_i32, %c0_i32_0 : i32, i32, i32
  }
  func.func @transform_2(%arg0: i32) -> (i32, i32, i32) {
    %c0_i32 = arith.constant 0 : i32
    %c0_i32_0 = arith.constant 0 : i32
    %c0_i32_1 = arith.constant 0 : i32
    return %arg0, %c0_i32, %c0_i32_0 : i32, i32, i32
  }
  func.func @transform_3(%arg0: i32) -> (i32, i32, i32) {
    %c0_i32 = arith.constant 0 : i32
    %c0_i32_0 = arith.constant 0 : i32
    %c0_i32_1 = arith.constant 0 : i32
    return %arg0, %c0_i32, %c0_i32_0 : i32, i32, i32
  }
  func.func @transform_4(%arg0: i32) -> (i32, i32, i32) {
    %c0_i32 = arith.constant 0 : i32
    %c0_i32_0 = arith.constant 0 : i32
    %c0_i32_1 = arith.constant 0 : i32
    return %arg0, %c0_i32, %c0_i32_0 : i32, i32, i32
  }
  func.func @transform_5(%arg0: i32) -> (i32, i32) {
    %c0_i32 = arith.constant 0 : i32
    %c0_i32_0 = arith.constant 0 : i32
    %c0_i32_1 = arith.constant 0 : i32
    return %c0_i32, %c0_i32_0 : i32, i32
  }
  func.func @transform_6(%arg0: i32) -> (i32, i32, i32) {
    %c0_i32 = arith.constant 0 : i32
    %c0_i32_0 = arith.constant 0 : i32
    %c0_i32_1 = arith.constant 0 : i32
    return %arg0, %c0_i32, %c0_i32_0 : i32, i32, i32
  }
}

module attributes {stable_mosaic.version = 11 : i64} {
  func.func @_ffn_ln_kernel(%arg0: i32, %arg1: memref<32x64xf32, #tpu.memory_space<vmem>>, %arg2: memref<32x64xf32, #tpu.memory_space<vmem>>, %arg3: memref<64x256xbf16, #tpu.memory_space<vmem>>, %arg4: memref<1x256xf32, #tpu.memory_space<vmem>>, %arg5: memref<256x64xbf16, #tpu.memory_space<vmem>>, %arg6: memref<1x64xf32, #tpu.memory_space<vmem>>, %arg7: memref<1x64xf32, #tpu.memory_space<vmem>>, %arg8: memref<1x64xf32, #tpu.memory_space<vmem>>, %arg9: memref<1x64xf32, #tpu.memory_space<vmem>>, %arg10: memref<1x64xf32, #tpu.memory_space<vmem>>, %arg11: memref<32x64xf32, #tpu.memory_space<vmem>>) attributes {dimension_semantics = [#tpu.dimension_semantics<parallel>], iteration_bounds = array<i64: 1>, scalar_prefetch = 0 : i64, scratch_operands = 0 : i64, tpu.core_type = #tpu.core_type<tc>, window_params = [{transform_indices = @transform_0, window_bounds = array<i64: 32, 64>}, {transform_indices = @transform_1, window_bounds = array<i64: 32, 64>}, {pipeline_mode = #tpu.pipeline_mode<synchronous>, transform_indices = @transform_2, window_bounds = array<i64: 64, 256>}, {pipeline_mode = #tpu.pipeline_mode<synchronous>, transform_indices = @transform_3, window_bounds = array<i64: 1, 256>}, {pipeline_mode = #tpu.pipeline_mode<synchronous>, transform_indices = @transform_4, window_bounds = array<i64: 256, 64>}, {pipeline_mode = #tpu.pipeline_mode<synchronous>, transform_indices = @transform_5, window_bounds = array<i64: 1, 64>}, {pipeline_mode = #tpu.pipeline_mode<synchronous>, transform_indices = @transform_6, window_bounds = array<i64: 1, 64>}, {pipeline_mode = #tpu.pipeline_mode<synchronous>, transform_indices = @transform_7, window_bounds = array<i64: 1, 64>}, {pipeline_mode = #tpu.pipeline_mode<synchronous>, transform_indices = @transform_8, window_bounds = array<i64: 1, 64>}, {pipeline_mode = #tpu.pipeline_mode<synchronous>, transform_indices = @transform_9, window_bounds = array<i64: 1, 64>}, {transform_indices = @transform_10, window_bounds = array<i64: 32, 64>}]} {
    %c0 = arith.constant 0 : index
    %c0_0 = arith.constant 0 : index
    %0 = vector.load %arg1[%c0, %c0_0] : memref<32x64xf32, #tpu.memory_space<vmem>>, vector<32x64xf32>
    %c0_1 = arith.constant 0 : index
    %c0_2 = arith.constant 0 : index
    %1 = vector.load %arg2[%c0_1, %c0_2] : memref<32x64xf32, #tpu.memory_space<vmem>>, vector<32x64xf32>
    %2 = arith.addf %0, %1 : vector<32x64xf32>
    %cst = arith.constant dense<0.000000e+00> : vector<32xf32>
    %3 = vector.multi_reduction <add>, %2, %cst [1] : vector<32x64xf32> to vector<32xf32>
    %4 = vector.shape_cast %3 : vector<32xf32> to vector<32x1xf32>
    %cst_3 = arith.constant 6.400000e+01 : f32
    %5 = vector.broadcast %cst_3 : f32 to vector<32x1xf32>
    %6 = arith.divf %4, %5 : vector<32x1xf32>
    %7 = vector.broadcast %6 : vector<32x1xf32> to vector<32x64xf32>
    %8 = arith.subf %2, %7 : vector<32x64xf32>
    %9 = arith.mulf %8, %8 : vector<32x64xf32>
    %cst_4 = arith.constant dense<0.000000e+00> : vector<32xf32>
    %10 = vector.multi_reduction <add>, %9, %cst_4 [1] : vector<32x64xf32> to vector<32xf32>
    %11 = vector.shape_cast %10 : vector<32xf32> to vector<32x1xf32>
    %cst_5 = arith.constant 6.400000e+01 : f32
    %12 = vector.broadcast %cst_5 : f32 to vector<32x1xf32>
    %13 = arith.divf %11, %12 : vector<32x1xf32>
    %cst_6 = arith.constant 9.99999974E-6 : f32
    %14 = vector.broadcast %cst_6 : f32 to vector<32x1xf32>
    %15 = arith.addf %13, %14 : vector<32x1xf32>
    %16 = math.rsqrt %15 : vector<32x1xf32>
    %17 = vector.broadcast %16 : vector<32x1xf32> to vector<32x64xf32>
    %18 = arith.mulf %8, %17 : vector<32x64xf32>
    %c0_7 = arith.constant 0 : index
    %c0_8 = arith.constant 0 : index
    %19 = vector.load %arg7[%c0_7, %c0_8] : memref<1x64xf32, #tpu.memory_space<vmem>>, vector<1x64xf32>
    %20 = vector.broadcast %19 : vector<1x64xf32> to vector<32x64xf32>
    %21 = arith.mulf %18, %20 : vector<32x64xf32>
    %c0_9 = arith.constant 0 : index
    %c0_10 = arith.constant 0 : index
    %22 = vector.load %arg8[%c0_9, %c0_10] : memref<1x64xf32, #tpu.memory_space<vmem>>, vector<1x64xf32>
    %23 = vector.broadcast %22 : vector<1x64xf32> to vector<32x64xf32>
    %24 = arith.addf %21, %23 : vector<32x64xf32>
    %25 = arith.truncf %24 : vector<32x64xf32> to vector<32x64xbf16>
    %c0_11 = arith.constant 0 : index
    %c0_12 = arith.constant 0 : index
    %26 = vector.load %arg3[%c0_11, %c0_12] : memref<64x256xbf16, #tpu.memory_space<vmem>>, vector<64x256xbf16>
    %cst_13 = arith.constant dense<0.000000e+00> : vector<32x256xf32>
    %27 = tpu.matmul %25, %26, %cst_13 {dimension_numbers = #tpu.dot_dimension_numbers<[1], [0], [0], [1], [0, 0, 1, 1], [], []>} : vector<32x64xbf16>, vector<64x256xbf16>, vector<32x256xf32> -> vector<32x256xf32>
    %c0_14 = arith.constant 0 : index
    %c0_15 = arith.constant 0 : index
    %28 = vector.load %arg4[%c0_14, %c0_15] : memref<1x256xf32, #tpu.memory_space<vmem>>, vector<1x256xf32>
    %29 = vector.broadcast %28 : vector<1x256xf32> to vector<32x256xf32>
    %30 = arith.addf %27, %29 : vector<32x256xf32>
    %cst_16 = arith.constant 0.000000e+00 : f32
    %31 = vector.broadcast %cst_16 : f32 to vector<32x256xf32>
    %32 = arith.maximumf %30, %31 : vector<32x256xf32>
    %33 = arith.truncf %32 : vector<32x256xf32> to vector<32x256xbf16>
    %c0_17 = arith.constant 0 : index
    %c0_18 = arith.constant 0 : index
    %34 = vector.load %arg5[%c0_17, %c0_18] : memref<256x64xbf16, #tpu.memory_space<vmem>>, vector<256x64xbf16>
    %cst_19 = arith.constant dense<0.000000e+00> : vector<32x64xf32>
    %35 = tpu.matmul %33, %34, %cst_19 {dimension_numbers = #tpu.dot_dimension_numbers<[1], [0], [0], [1], [0, 0, 1, 1], [], []>} : vector<32x256xbf16>, vector<256x64xbf16>, vector<32x64xf32> -> vector<32x64xf32>
    %c0_20 = arith.constant 0 : index
    %c0_21 = arith.constant 0 : index
    %36 = vector.load %arg6[%c0_20, %c0_21] : memref<1x64xf32, #tpu.memory_space<vmem>>, vector<1x64xf32>
    %37 = vector.broadcast %36 : vector<1x64xf32> to vector<32x64xf32>
    %38 = arith.addf %35, %37 : vector<32x64xf32>
    %39 = arith.addf %24, %38 : vector<32x64xf32>
    %cst_22 = arith.constant dense<0.000000e+00> : vector<32xf32>
    %40 = vector.multi_reduction <add>, %39, %cst_22 [1] : vector<32x64xf32> to vector<32xf32>
    %41 = vector.shape_cast %40 : vector<32xf32> to vector<32x1xf32>
    %cst_23 = arith.constant 6.400000e+01 : f32
    %42 = vector.broadcast %cst_23 : f32 to vector<32x1xf32>
    %43 = arith.divf %41, %42 : vector<32x1xf32>
    %44 = vector.broadcast %43 : vector<32x1xf32> to vector<32x64xf32>
    %45 = arith.subf %39, %44 : vector<32x64xf32>
    %46 = arith.mulf %45, %45 : vector<32x64xf32>
    %cst_24 = arith.constant dense<0.000000e+00> : vector<32xf32>
    %47 = vector.multi_reduction <add>, %46, %cst_24 [1] : vector<32x64xf32> to vector<32xf32>
    %48 = vector.shape_cast %47 : vector<32xf32> to vector<32x1xf32>
    %cst_25 = arith.constant 6.400000e+01 : f32
    %49 = vector.broadcast %cst_25 : f32 to vector<32x1xf32>
    %50 = arith.divf %48, %49 : vector<32x1xf32>
    %cst_26 = arith.constant 9.99999974E-6 : f32
    %51 = vector.broadcast %cst_26 : f32 to vector<32x1xf32>
    %52 = arith.addf %50, %51 : vector<32x1xf32>
    %53 = math.rsqrt %52 : vector<32x1xf32>
    %54 = vector.broadcast %53 : vector<32x1xf32> to vector<32x64xf32>
    %55 = arith.mulf %45, %54 : vector<32x64xf32>
    %c0_27 = arith.constant 0 : index
    %c0_28 = arith.constant 0 : index
    %56 = vector.load %arg9[%c0_27, %c0_28] : memref<1x64xf32, #tpu.memory_space<vmem>>, vector<1x64xf32>
    %57 = vector.broadcast %56 : vector<1x64xf32> to vector<32x64xf32>
    %58 = arith.mulf %55, %57 : vector<32x64xf32>
    %c0_29 = arith.constant 0 : index
    %c0_30 = arith.constant 0 : index
    %59 = vector.load %arg10[%c0_29, %c0_30] : memref<1x64xf32, #tpu.memory_space<vmem>>, vector<1x64xf32>
    %60 = vector.broadcast %59 : vector<1x64xf32> to vector<32x64xf32>
    %61 = arith.addf %58, %60 : vector<32x64xf32>
    %c0_31 = arith.constant 0 : index
    %c0_32 = arith.constant 0 : index
    %62 = vector.load %arg11[%c0_31, %c0_32] : memref<32x64xf32, #tpu.memory_space<vmem>>, vector<32x64xf32>
    tpu.vector_store %arg11[%c0_31, %c0_32], %61 {strides = array<i32>} : memref<32x64xf32, #tpu.memory_space<vmem>>, vector<32x64xf32>,
    return
  }
  func.func @transform_0(%arg0: i32) -> (i32, i32) {
    %c0_i32 = arith.constant 0 : i32
    %c0_i32_0 = arith.constant 0 : i32
    return %arg0, %c0_i32 : i32, i32
  }
  func.func @transform_1(%arg0: i32) -> (i32, i32) {
    %c0_i32 = arith.constant 0 : i32
    %c0_i32_0 = arith.constant 0 : i32
    return %arg0, %c0_i32 : i32, i32
  }
  func.func @transform_2(%arg0: i32) -> (i32, i32) {
    %c0_i32 = arith.constant 0 : i32
    %c0_i32_0 = arith.constant 0 : i32
    %c0_i32_1 = arith.constant 0 : i32
    return %c0_i32, %c0_i32_0 : i32, i32
  }
  func.func @transform_3(%arg0: i32) -> (i32, i32) {
    %c0_i32 = arith.constant 0 : i32
    %c0_i32_0 = arith.constant 0 : i32
    %c0_i32_1 = arith.constant 0 : i32
    return %c0_i32, %c0_i32_0 : i32, i32
  }
  func.func @transform_4(%arg0: i32) -> (i32, i32) {
    %c0_i32 = arith.constant 0 : i32
    %c0_i32_0 = arith.constant 0 : i32
    %c0_i32_1 = arith.constant 0 : i32
    return %c0_i32, %c0_i32_0 : i32, i32
  }
  func.func @transform_5(%arg0: i32) -> (i32, i32) {
    %c0_i32 = arith.constant 0 : i32
    %c0_i32_0 = arith.constant 0 : i32
    %c0_i32_1 = arith.constant 0 : i32
    return %c0_i32, %c0_i32_0 : i32, i32
  }
  func.func @transform_6(%arg0: i32) -> (i32, i32) {
    %c0_i32 = arith.constant 0 : i32
    %c0_i32_0 = arith.constant 0 : i32
    %c0_i32_1 = arith.constant 0 : i32
    return %c0_i32, %c0_i32_0 : i32, i32
  }
  func.func @transform_7(%arg0: i32) -> (i32, i32) {
    %c0_i32 = arith.constant 0 : i32
    %c0_i32_0 = arith.constant 0 : i32
    %c0_i32_1 = arith.constant 0 : i32
    return %c0_i32, %c0_i32_0 : i32, i32
  }
  func.func @transform_8(%arg0: i32) -> (i32, i32) {
    %c0_i32 = arith.constant 0 : i32
    %c0_i32_0 = arith.constant 0 : i32
    %c0_i32_1 = arith.constant 0 : i32
    return %c0_i32, %c0_i32_0 : i32, i32
  }
  func.func @transform_9(%arg0: i32) -> (i32, i32) {
    %c0_i32 = arith.constant 0 : i32
    %c0_i32_0 = arith.constant 0 : i32
    %c0_i32_1 = arith.constant 0 : i32
    return %c0_i32, %c0_i32_0 : i32, i32
  }
  func.func @transform_10(%arg0: i32) -> (i32, i32) {
    %c0_i32 = arith.constant 0 : i32
    %c0_i32_0 = arith.constant 0 : i32
    return %arg0, %c0_i32 : i32, i32
  }
}

</mosaic_0001>

<llo_original>
// kernel: encoder_layer_forward.3
$region0: #{encoder_layer_forward.3}
  #allocation0 [shape = 'u32[]', space=smem, size = 0x4, offset = 0x4, fixed_abs, tag = 'smem constant byte address 0x4 - core index']
  #allocation1 [shape = 'u32[144,128]{1,0:T(1,128)}', space=vmem, size = 0x12000, scoped, tag = 'internal scratch']
  %s0 = inlined_call_operand.vmem [shape: bf16[4,16,32], index: 0, kind: input, shape index: {}, may-alias: {0,1}]
  %s1 = inlined_call_operand.vmem [shape: bf16[4,16,32], index: 1, kind: input, shape index: {}, may-alias: {0,1}]
  %s2 = inlined_call_operand.hbm [shape: f32[16,16], index: 2, kind: input, shape index: {}]
  %s3 = inlined_call_operand.vmem [shape: f32[4,1,16], index: 3, kind: output, shape index: {}]
  %s4 = sld [smem:[#allocation0]]
  $region56: #{encoder_layer_forward.3} parent=0
    _
  %s6 = ssub.s32 1, %s4
  %s7 = scalar_select 0, %s6, %s4
  $region1: #{encoder_layer_forward.3} parent=0
    #allocation2 [shape = 'u8[8192]{0}', space=vmem, size = 0x2000, scoped, tag = 'input window, operand 2, single buffered']
    #allocation3 [shape = 's32[2]{0}', space=sflag, size = 0x8, scoped, tag = 'scoped memory for encoder_layer_forward.3']
    %8 = vsyncpa [#allocation3], 0
    loop: start=0, step=1, limit=4
    $region2: #{encoder_layer_forward.3} parent=1 // loop_pre_header
      _
    $region3: #{encoder_layer_forward.3} parent=1 // loop_header
      %s10 = sphi 0, %s14
      %p11 = scmp.ge.s32.totalorder %s10, 4
      %s20 = sphi 0, %s22
      %s23 = sphi 0, %s20
      %s24 = sphi 0, %s23
      %s40 = sphi 0, %s24
      %s46 = sphi 0, %s48
      %s49 = sphi 0, %s46
      %s50 = sphi 0, %s49
      %s66 = sphi 0, %s50
      %s70 = sphi 0, %s70
      %s72 = sphi 0, %s70
      %s73 = sphi 0, %s72
      %s87 = sphi 0, %s73
      %s93 = sphi 0, %s95
      %s96 = sphi 0, %s93
      %s97 = sphi 0, %s96
      %s113 = sphi 0, %s97
    $region4: #{encoder_layer_forward.3} parent=1 // loop_header_branch
      %13 = sbr.rel (%p11) target = $region8
    $region5: #{encoder_layer_forward.3} parent=1 // loop_body
      %s15 = ssub.s32 %s10, 1
      %s16 = ssub.s32 %s10, 2
      %s17 = sadd.s32 %s10, 1
      %s18 = ssub.s32 %s10, %s17
      %p19 = scmp.eq.s32.totalorder %s18, 0
      %s21 = sadd.s32 %s20, 1
      %s22 = scalar_select %p19, %s20, %s21
      %p25 = pneg %p19
      %p26 = scmp.eq.s32.totalorder %s10, 1
      %p27 = por %p25, %p26
      %p28 = scmp.ne.s32.totalorder %s20, %s23
      %p29 = scmp.eq.s32.totalorder %s10, 0
      %p30 = por %p28, %p29
      %p31 = scmp.ne.s32.totalorder %s20, %s23
      %p32 = scmp.eq.s32.totalorder %s15, 1
      %p33 = por %p31, %p32
      %p34 = scmp.ne.s32.totalorder %s23, %s24
      %p35 = scmp.eq.s32.totalorder %s15, 0
      %p36 = por %p34, %p35
      %p37 = scmp.ne.s32.totalorder %s23, %s24
      %p38 = scmp.eq.s32.totalorder %s16, 1
      %p39 = por %p37, %p38
      %p41 = scmp.ne.s32.totalorder %s24, %s40
      %p42 = scmp.eq.s32.totalorder %s16, 0
      %p43 = por %p41, %p42
      %s44 = ssub.s32 %s10, %s17
      %p45 = scmp.eq.s32.totalorder %s44, 0
      %s47 = sadd.s32 %s46, 1
      %s48 = scalar_select %p45, %s46, %s47
      %p51 = pneg %p45
      %p52 = scmp.eq.s32.totalorder %s10, 1
      %p53 = por %p51, %p52
      %p54 = scmp.ne.s32.totalorder %s46, %s49
      %p55 = scmp.eq.s32.totalorder %s10, 0
      %p56 = por %p54, %p55
      %p57 = scmp.ne.s32.totalorder %s46, %s49
      %p58 = scmp.eq.s32.totalorder %s15, 1
      %p59 = por %p57, %p58
      %p60 = scmp.ne.s32.totalorder %s49, %s50
      %p61 = scmp.eq.s32.totalorder %s15, 0
      %p62 = por %p60, %p61
      %p63 = scmp.ne.s32.totalorder %s49, %s50
      %p64 = scmp.eq.s32.totalorder %s16, 1
      %p65 = por %p63, %p64
      %p67 = scmp.ne.s32.totalorder %s50, %s66
      %p68 = scmp.eq.s32.totalorder %s16, 0
      %p69 = por %p67, %p68
      %s71 = sadd.s32 %s70, 1
      %p74 = scmp.eq.s32.totalorder %s10, 1
      %p75 = scmp.ne.s32.totalorder %s70, %s72
      %p76 = scmp.eq.s32.totalorder %s10, 0
      %p77 = por %p75, %p76
      %p78 = scmp.ne.s32.totalorder %s70, %s72
      %p79 = scmp.eq.s32.totalorder %s15, 1
      %p80 = por %p78, %p79
      %p81 = scmp.ne.s32.totalorder %s72, %s73
      %p82 = scmp.eq.s32.totalorder %s15, 0
      %p83 = por %p81, %p82
      %p84 = scmp.ne.s32.totalorder %s72, %s73
      %p85 = scmp.eq.s32.totalorder %s16, 1
      %p86 = por %p84, %p85
      %p88 = scmp.ne.s32.totalorder %s73, %s87
      %p89 = scmp.eq.s32.totalorder %s16, 0
      %p90 = por %p88, %p89
      %s91 = ssub.s32 %s10, %s17
      %p92 = scmp.eq.s32.totalorder %s91, 0
      %s94 = sadd.s32 %s93, 1
      %s95 = scalar_select %p92, %s93, %s94
      %p98 = pneg %p92
      %p99 = scmp.eq.s32.totalorder %s10, 1
      %p100 = por %p98, %p99
      %p101 = scmp.ne.s32.totalorder %s93, %s96
      %p102 = scmp.eq.s32.totalorder %s10, 0
      %p103 = por %p101, %p102
      %p104 = scmp.ne.s32.totalorder %s93, %s96
      %p105 = scmp.eq.s32.totalorder %s15, 1
      %p106 = por %p104, %p105
      %p107 = scmp.ne.s32.totalorder %s96, %s97
      %p108 = scmp.eq.s32.totalorder %s15, 0
      %p109 = por %p107, %p108
      %p110 = scmp.ne.s32.totalorder %s96, %s97
      %p111 = scmp.eq.s32.totalorder %s16, 1
      %p112 = por %p110, %p111
      %p114 = scmp.ne.s32.totalorder %s97, %s113
      %p115 = scmp.eq.s32.totalorder %s16, 0
      %p116 = por %p114, %p115
      %p117 = scmp.le.s32.totalorder 1, %s10
      %p118 = scmp.lt.s32.totalorder %s10, 3
      %p119 = pnand %p117, %p118
      %p120 = pneg %p119
      // Predicated region
      $region9: #{encoder_layer_forward.3} parent=5 // pred_check
        _
      $region10: #{encoder_layer_forward.3} parent=5 // pred_check_branch
        %122 = sbr.rel (%p119) target = $region12
      $region11: #{encoder_layer_forward.3} parent=5 // pred_region
        %s123 = ssub.s32 %s10, 1
        // Predicated region
        $region13: #{encoder_layer_forward.3} parent=11 // pred_check
          %p124 = pneg %p83
        $region14: #{encoder_layer_forward.3} parent=11 // pred_check_branch
          %126 = sbr.rel (%p124) target = $region16
        $region15: #{encoder_layer_forward.3} parent=11 // pred_region
          %s128 = ssub.s32 256, 256
          %129 = vsyncadd [#allocation3], %s128
          %s130 = sshll.u32 [#allocation2], 4
          %s131 = int_to_ptr.vmem [resolvable:$true] %s130
          %136 = dma.hbm_to_vmem [thread:$0]  %s2, 256, %s131, [#allocation3], 128, 128, 8
        $region16: #{encoder_layer_forward.3} parent=11 // pred_fallthru
          _
      $region12: #{encoder_layer_forward.3} parent=5 // pred_fallthru
        _
      %p137 = scmp.lt.s32.totalorder %s10, 2
      // Predicated region
      $region17: #{encoder_layer_forward.3} parent=5 // pred_check
        %p138 = pneg %p137
      $region18: #{encoder_layer_forward.3} parent=5 // pred_check_branch
        %140 = sbr.rel (%p138) target = $region20
      $region19: #{encoder_layer_forward.3} parent=5 // pred_region
        // Predicated region
        $region21: #{encoder_layer_forward.3} parent=19 // pred_check
          %p141 = pneg %p30
        $region22: #{encoder_layer_forward.3} parent=19 // pred_check_branch
          %143 = sbr.rel (%p141) target = $region24
        $region23: #{encoder_layer_forward.3} parent=19 // pred_region
          %s144 = smul.u32 2, %s10
          %p145 = scmp.lt.s32.totalorder %s144, 3
          %s146 = scalar_select %p145, %s144, 3
          %s147 = smul.addr %s146, 2
          %s148 = smul.addr %s147, 4
          %s149 = scalar_lea.vmem %s0, %s148
          %s150 = smul.u32 2, %s10
        $region24: #{encoder_layer_forward.3} parent=19 // pred_fallthru
          _
        // Predicated region
        $region25: #{encoder_layer_forward.3} parent=19 // pred_check
          %p151 = pneg %p56
        $region26: #{encoder_layer_forward.3} parent=19 // pred_check_branch
          %153 = sbr.rel (%p151) target = $region28
        $region27: #{encoder_layer_forward.3} parent=19 // pred_region
          %s154 = smul.u32 2, %s10
          %p155 = scmp.lt.s32.totalorder %s154, 3
          %s156 = scalar_select %p155, %s154, 3
          %s157 = smul.addr %s156, 2
          %s158 = smul.addr %s157, 4
          %s159 = scalar_lea.vmem %s1, %s158
          %s160 = smul.u32 2, %s10
        $region28: #{encoder_layer_forward.3} parent=19 // pred_fallthru
          _
      $region20: #{encoder_layer_forward.3} parent=5 // pred_fallthru
        _
      %p161 = scmp.le.s32.totalorder 1, %s10
      %p162 = scmp.lt.s32.totalorder %s10, 3
      %p163 = pnand %p161, %p162
      %p164 = pneg %p163
      // Predicated region
      $region29: #{encoder_layer_forward.3} parent=5 // pred_check
        _
      $region30: #{encoder_layer_forward.3} parent=5 // pred_check_branch
        %166 = sbr.rel (%p163) target = $region32
      $region31: #{encoder_layer_forward.3} parent=5 // pred_region
        %s167 = ssub.s32 %s10, 1
        // Predicated region
        $region33: #{encoder_layer_forward.3} parent=31 // pred_check
          %p168 = pneg %p83
        $region34: #{encoder_layer_forward.3} parent=31 // pred_check_branch
          %170 = sbr.rel (%p168) target = $region36
        $region35: #{encoder_layer_forward.3} parent=31 // pred_region
          %171 = dma.done [#allocation3], 256
        $region36: #{encoder_layer_forward.3} parent=31 // pred_fallthru
          _
        %s172 = smul.u32 2, %s15
        %p173 = scmp.lt.s32.totalorder %s172, 3
        %s174 = scalar_select %p173, %s172, 3
        %s175 = smul.addr %s174, 2
        %s176 = smul.addr %s175, 4
        %s177 = scalar_lea.vmem %s0, %s176
        %p178 = pneg %p36
        %p179 = pneg %p33
        %s180 = smul.u32 2, %s15
        %p181 = scmp.lt.s32.totalorder %s180, 3
        %s182 = scalar_select %p181, %s180, 3
        %s183 = smul.addr %s182, 2
        %s184 = smul.addr %s183, 4
        %s185 = scalar_lea.vmem %s1, %s184
        %p186 = pneg %p62
        %p187 = pneg %p59
        %p188 = pneg %p83
        %p189 = pneg %p80
        %p190 = pneg %p109
        %p191 = pneg %p106
        %s192 = smul.u32 2, %s15
        %p193 = scmp.lt.s32.totalorder %s192, 3
        %s194 = scalar_select %p193, %s192, 3
        %s195 = scalar_lea.vmem %s3, %s194
        %s196 = smul.u32 2, %s15
        %p197 = scmp.lt.s32.totalorder %s196, 3
        %s198 = scalar_select %p197, %s196, 3
        %s199 = smul.addr %s198, 2
        %s200 = smul.addr %s199, 4
        %s201 = scalar_lea.vmem %s0, %s200
        %s202 = smul.u32 2, %s15
        %s203 = smul.u32 2, %s15
        %p204 = scmp.lt.s32.totalorder %s203, 3
        %s205 = scalar_select %p204, %s203, 3
        %s206 = smul.addr %s205, 2
        %s207 = smul.addr %s206, 4
        %s208 = scalar_lea.vmem %s1, %s207
        %s209 = smul.u32 2, %s15
        %s210 = smul.u32 2, %s15
        %p211 = scmp.lt.s32.totalorder %s210, 3
        %s212 = scalar_select %p211, %s210, 3
        %s213 = scalar_lea.vmem %s3, %s212
        %s214 = smul.u32 2, %s15
        %v216 = vld [vmem:[#allocation2] sm:$0xff]
        %v217 = vld [vmem:[#allocation2 + $0x8] sm:$0xff]
        %vm218 = vcmp.gt.f32.partialorder %v216, 0.5
        %vm219 = vcmp.gt.f32.partialorder %v217, 0.5
        loop: start=0, step=1, limit=2
        $region37: #{encoder_layer_forward.3} parent=31 // loop_pre_header
          _
        $region38: #{encoder_layer_forward.3} parent=31 // loop_header
          %s221 = sphi 0, %s225
          %p222 = scmp.ge.s32.totalorder %s221, 2
        $region39: #{encoder_layer_forward.3} parent=31 // loop_header_branch
          %224 = sbr.rel (%p222) target = $region43
        $region40: #{encoder_layer_forward.3} parent=31 // loop_body
          %s226 = smul.u32 %s221, 2
          %s227 = smul.addr %s226, 4
          %s228 = scalar_lea.vmem %s201, %s227
          %v229 = vld [vmem:[%s228] sm:$0xf]
          %v230 = vld [vmem:[%s228 + $0x4] sm:$0xf]
          %s231 = smul.addr %s226, 4
          %s232 = scalar_lea.vmem %s208, %s231
          %v233 = vld [vmem:[%s232] sm:$0xf]
          %v234 = vld [vmem:[%s232 + $0x4] sm:$0xf]
          %v237 = vunpack.c.l.b16 %v233
          %v238 = vunpack.c.l.b16 %v234
          %v239 = vpack.c.b16 %v238, %v237
          %v242 = vunpack.c.l.b16 %v229
          %v243 = vunpack.c.l.b16 %v230
          %v244 = vpack.c.b16 %v243, %v242
          %vm245 = vcmask 261120
          %v247 = vsel %vm245, %v239, 0
          %v250 = vsel %vm245, %v244, 0
          %252 = vmatprep.subr.bf16.mxu0 0
          %253 = vmatpush1.bf16.xpose.msra.mxu0 0
          %254 = vmatprep.subr.bf16.mxu0 0
          %255 = vmatpush1.bf16.xpose.msra.mxu0 0
          %256 = vmatprep.subr.bf16.mxu0 0
          %257 = vmatpush1.bf16.xpose.msra.mxu0 0
          %258 = vmatprep.subr.bf16.mxu0 0
          %259 = vmatpush1.bf16.xpose.msra.mxu0 0
          %260 = vmatprep.subr.bf16.mxu0 0
          %261 = vmatpush1.bf16.xpose.msra.mxu0 0
          %262 = vmatprep.subr.bf16.mxu0 0
          %263 = vmatpush1.bf16.xpose.msra.mxu0 0
          %264 = vmatprep.subr.bf16.mxu0 0
          %265 = vmatpush1.bf16.xpose.msra.mxu0 0
          %266 = vmatprep.subr.bf16.mxu0 0
          %267 = vmatpush1.bf16.xpose.msra.mxu0 %v250
          %268 = vmatprep.subr.bf16.mxu0 0
          %269 = vmatpush2.bf16.xpose.msra.mxu0 0
          %270 = vmatprep.subr.bf16.mxu0 0
          %271 = vmatpush2.bf16.xpose.msra.mxu0 0
          %272 = vmatprep.subr.bf16.mxu0 0
          %273 = vmatpush2.bf16.xpose.msra.mxu0 0
          %274 = vmatprep.subr.bf16.mxu0 0
          %275 = vmatpush2.bf16.xpose.msra.mxu0 0
          %276 = vmatprep.subr.bf16.mxu0 0
          %277 = vmatpush2.bf16.xpose.msra.mxu0 0
          %278 = vmatprep.subr.bf16.mxu0 0
          %279 = vmatpush2.bf16.xpose.msra.mxu0 0
          %280 = vmatprep.subr.bf16.mxu0 0
          %281 = vmatpush2.bf16.xpose.msra.mxu0 0
          %282 = vmatprep.subr.bf16.mxu0 0
          %283 = vmatpush2.bf16.xpose.msra.mxu0 0
          %284 = vmatprep.mubr.bf16.mxu0 0
          %285 = vmatmul.mubr.bf16.gmra.mxu0 %v247
          %v286 = vpop.f32.mrf.mxu0
          %v287 = vadd.f32 0.0, %v286
          %v288 = vpop.f32.mrf.mxu0
          %v289 = vpop.f32.mrf.mxu0
          %v290 = vadd.f32 0.0, %v289
          %v291 = vpop.f32.mrf.mxu0
          %292 = vdwg.mxu0
          %v293 = vsel %vm218, %v287, -inf
          %v294 = vsel %vm219, %v290, -inf
          %vm295 = vcmask 130048
          %v296 = vsel %vm295, %v293, -inf
          %v297 = vsel %vm295, %v294, -inf
          %v298 = vmax.f32 %v296, %v297
          %v299 = vrot.slane %v298, 4
          %v300 = vmax.f32 %v298, %v299
          %v301 = vrot.slane %v300, 2
          %v302 = vmax.f32 %v300, %v301
          %v303 = vrot.slane %v302, 1
          %v304 = vmax.f32 %v302, %v303
          %v305 = vmul.f32 %v287, %v216
          %v306 = vmul.f32 %v290, %v217
          %v307 = vsel %vm295, %v305, 0.0
          %v308 = vsel %vm295, %v306, 0.0
          %v309 = vadd.f32 %v307, %v308
          %v310 = vrot.slane %v309, 4
          %v311 = vadd.f32 %v309, %v310
          %v312 = vrot.slane %v311, 2
          %v313 = vadd.f32 %v311, %v312
          %v314 = vrot.slane %v313, 1
          %v315 = vadd.f32 %v313, %v314
          %v316 = vmul.f32 %v315, 0.0625
          %v317 = vsub.f32 %v304, %v316
          %s318 = scalar_lea.vmem %s213, %s221
          %vm319 = vcmask 122880
          %320 = vst.msk [vmem:[%s318] sm:$0x1] %vm319, %v317
        $region41: #{encoder_layer_forward.3} parent=31 // loop_footer
          %s225 = sadd.s32 1, %s221
        $region42: #{encoder_layer_forward.3} parent=31 // loop_footer_branch
          %220 = sbr.rel target = $region38
        $region43: #{encoder_layer_forward.3} parent=31 // loop_exit
          _
        %s321 = smul.u32 2, %s15
        %p322 = scmp.lt.s32.totalorder %s321, 3
        %s323 = scalar_select %p322, %s321, 3
        %s324 = scalar_lea.vmem %s3, %s323
        // Predicated region
        $region44: #{encoder_layer_forward.3} parent=31 // pred_check
          %p325 = pneg %p106
        $region45: #{encoder_layer_forward.3} parent=31 // pred_check_branch
          %327 = sbr.rel (%p325) target = $region47
        $region46: #{encoder_layer_forward.3} parent=31 // pred_region
          %s328 = smul.u32 2, %s15
        $region47: #{encoder_layer_forward.3} parent=31 // pred_fallthru
          _
      $region32: #{encoder_layer_forward.3} parent=5 // pred_fallthru
        _
      %p329 = scmp.le.s32.totalorder 2, %s10
      // Predicated region
      $region48: #{encoder_layer_forward.3} parent=5 // pred_check
        %p330 = pneg %p329
      $region49: #{encoder_layer_forward.3} parent=5 // pred_check_branch
        %332 = sbr.rel (%p330) target = $region51
      $region50: #{encoder_layer_forward.3} parent=5 // pred_region
        %s333 = ssub.s32 %s10, 2
        // Predicated region
        $region52: #{encoder_layer_forward.3} parent=50 // pred_check
          %p334 = pneg %p112
        $region53: #{encoder_layer_forward.3} parent=50 // pred_check_branch
          %336 = sbr.rel (%p334) target = $region55
        $region54: #{encoder_layer_forward.3} parent=50 // pred_region
          %s337 = smul.u32 2, %s16
          %p338 = scmp.lt.s32.totalorder %s337, 3
          %s339 = scalar_select %p338, %s337, 3
          %s340 = scalar_lea.vmem %s3, %s339
        $region55: #{encoder_layer_forward.3} parent=50 // pred_fallthru
          _
      $region51: #{encoder_layer_forward.3} parent=5 // pred_fallthru
        _
    $region6: #{encoder_layer_forward.3} parent=1 // loop_footer
      %s14 = sadd.s32 1, %s10
    $region7: #{encoder_layer_forward.3} parent=1 // loop_footer_branch
      %9 = sbr.rel target = $region3
    $region8: #{encoder_layer_forward.3} parent=1 // loop_exit
      _
    %341 = vsyncpa [#allocation3], 1
    %s342 = scalar_lea.sflag [#allocation3], 1
    %343 = vsyncpa %s342, 1

// kernel: encoder_layer_forward.4
$region0: #{encoder_layer_forward.4}
  #allocation0 [shape = 'u32[]', space=smem, size = 0x4, offset = 0x4, fixed_abs, tag = 'smem constant byte address 0x4 - core index']
  #allocation1 [shape = 'u32[144,128]{1,0:T(1,128)}', space=vmem, size = 0x12000, scoped, tag = 'internal scratch']
  %s0 = inlined_call_operand.vmem [shape: bf16[4,15,32], index: 0, kind: input, shape index: {}]
  %s1 = inlined_call_operand.vmem [shape: bf16[4,16,32], index: 1, kind: input, shape index: {}, may-alias: {1,2}]
  %s2 = inlined_call_operand.vmem [shape: bf16[4,16,32], index: 2, kind: input, shape index: {}, may-alias: {1,2}]
  %s3 = inlined_call_operand.vmem [shape: s32[4,15,1], index: 3, kind: input, shape index: {}]
  %s4 = inlined_call_operand.vmem [shape: s32[4,1,15], index: 4, kind: input, shape index: {}]
  %s5 = inlined_call_operand.vmem [shape: bf16[16,16], index: 5, kind: input, shape index: {}]
  %s6 = inlined_call_operand.vmem [shape: f32[4,16,32], index: 6, kind: output, shape index: {}]
  %s7 = sld [smem:[#allocation0]]
  $region64: #{encoder_layer_forward.4} parent=0
    _
  %s9 = ssub.s32 1, %s7
  %s10 = scalar_select 0, %s9, %s7
  loop: start=0, step=1, limit=4
  $region2: #{encoder_layer_forward.4} parent=0 // loop_pre_header
    _
  $region3: #{encoder_layer_forward.4} parent=0 // loop_header
    %s12 = sphi 0, %s16
    %p13 = scmp.ge.s32.totalorder %s12, 4
    %s22 = sphi 0, %s24
    %s25 = sphi 0, %s22
    %s26 = sphi 0, %s25
    %s42 = sphi 0, %s26
    %s48 = sphi 0, %s50
    %s51 = sphi 0, %s48
    %s52 = sphi 0, %s51
    %s68 = sphi 0, %s52
    %s74 = sphi 0, %s76
    %s77 = sphi 0, %s74
    %s78 = sphi 0, %s77
    %s94 = sphi 0, %s78
    %s100 = sphi 0, %s102
    %s103 = sphi 0, %s100
    %s104 = sphi 0, %s103
    %s120 = sphi 0, %s104
    %s126 = sphi 0, %s128
    %s129 = sphi 0, %s126
    %s130 = sphi 0, %s129
    %s146 = sphi 0, %s130
    %s150 = sphi 0, %s150
    %s152 = sphi 0, %s150
    %s153 = sphi 0, %s152
    %s167 = sphi 0, %s153
    %s173 = sphi 0, %s175
    %s176 = sphi 0, %s173
    %s177 = sphi 0, %s176
    %s193 = sphi 0, %s177
  $region4: #{encoder_layer_forward.4} parent=0 // loop_header_branch
    %15 = sbr.rel (%p13) target = $region8
  $region5: #{encoder_layer_forward.4} parent=0 // loop_body
    %s17 = ssub.s32 %s12, 1
    %s18 = ssub.s32 %s12, 2
    %s19 = sadd.s32 %s12, 1
    %s20 = ssub.s32 %s12, %s19
    %p21 = scmp.eq.s32.totalorder %s20, 0
    %s23 = sadd.s32 %s22, 1
    %s24 = scalar_select %p21, %s22, %s23
    %p27 = pneg %p21
    %p28 = scmp.eq.s32.totalorder %s12, 1
    %p29 = por %p27, %p28
    %p30 = scmp.ne.s32.totalorder %s22, %s25
    %p31 = scmp.eq.s32.totalorder %s12, 0
    %p32 = por %p30, %p31
    %p33 = scmp.ne.s32.totalorder %s22, %s25
    %p34 = scmp.eq.s32.totalorder %s17, 1
    %p35 = por %p33, %p34
    %p36 = scmp.ne.s32.totalorder %s25, %s26
    %p37 = scmp.eq.s32.totalorder %s17, 0
    %p38 = por %p36, %p37
    %p39 = scmp.ne.s32.totalorder %s25, %s26
    %p40 = scmp.eq.s32.totalorder %s18, 1
    %p41 = por %p39, %p40
    %p43 = scmp.ne.s32.totalorder %s26, %s42
    %p44 = scmp.eq.s32.totalorder %s18, 0
    %p45 = por %p43, %p44
    %s46 = ssub.s32 %s12, %s19
    %p47 = scmp.eq.s32.totalorder %s46, 0
    %s49 = sadd.s32 %s48, 1
    %s50 = scalar_select %p47, %s48, %s49
    %p53 = pneg %p47
    %p54 = scmp.eq.s32.totalorder %s12, 1
    %p55 = por %p53, %p54
    %p56 = scmp.ne.s32.totalorder %s48, %s51
    %p57 = scmp.eq.s32.totalorder %s12, 0
    %p58 = por %p56, %p57
    %p59 = scmp.ne.s32.totalorder %s48, %s51
    %p60 = scmp.eq.s32.totalorder %s17, 1
    %p61 = por %p59, %p60
    %p62 = scmp.ne.s32.totalorder %s51, %s52
    %p63 = scmp.eq.s32.totalorder %s17, 0
    %p64 = por %p62, %p63
    %p65 = scmp.ne.s32.totalorder %s51, %s52
    %p66 = scmp.eq.s32.totalorder %s18, 1
    %p67 = por %p65, %p66
    %p69 = scmp.ne.s32.totalorder %s52, %s68
    %p70 = scmp.eq.s32.totalorder %s18, 0
    %p71 = por %p69, %p70
    %s72 = ssub.s32 %s12, %s19
    %p73 = scmp.eq.s32.totalorder %s72, 0
    %s75 = sadd.s32 %s74, 1
    %s76 = scalar_select %p73, %s74, %s75
    %p79 = pneg %p73
    %p80 = scmp.eq.s32.totalorder %s12, 1
    %p81 = por %p79, %p80
    %p82 = scmp.ne.s32.totalorder %s74, %s77
    %p83 = scmp.eq.s32.totalorder %s12, 0
    %p84 = por %p82, %p83
    %p85 = scmp.ne.s32.totalorder %s74, %s77
    %p86 = scmp.eq.s32.totalorder %s17, 1
    %p87 = por %p85, %p86
    %p88 = scmp.ne.s32.totalorder %s77, %s78
    %p89 = scmp.eq.s32.totalorder %s17, 0
    %p90 = por %p88, %p89
    %p91 = scmp.ne.s32.totalorder %s77, %s78
    %p92 = scmp.eq.s32.totalorder %s18, 1
    %p93 = por %p91, %p92
    %p95 = scmp.ne.s32.totalorder %s78, %s94
    %p96 = scmp.eq.s32.totalorder %s18, 0
    %p97 = por %p95, %p96
    %s98 = ssub.s32 %s12, %s19
    %p99 = scmp.eq.s32.totalorder %s98, 0
    %s101 = sadd.s32 %s100, 1
    %s102 = scalar_select %p99, %s100, %s101
    %p105 = pneg %p99
    %p106 = scmp.eq.s32.totalorder %s12, 1
    %p107 = por %p105, %p106
    %p108 = scmp.ne.s32.totalorder %s100, %s103
    %p109 = scmp.eq.s32.totalorder %s12, 0
    %p110 = por %p108, %p109
    %p111 = scmp.ne.s32.totalorder %s100, %s103
    %p112 = scmp.eq.s32.totalorder %s17, 1
    %p113 = por %p111, %p112
    %p114 = scmp.ne.s32.totalorder %s103, %s104
    %p115 = scmp.eq.s32.totalorder %s17, 0
    %p116 = por %p114, %p115
    %p117 = scmp.ne.s32.totalorder %s103, %s104
    %p118 = scmp.eq.s32.totalorder %s18, 1
    %p119 = por %p117, %p118
    %p121 = scmp.ne.s32.totalorder %s104, %s120
    %p122 = scmp.eq.s32.totalorder %s18, 0
    %p123 = por %p121, %p122
    %s124 = ssub.s32 %s12, %s19
    %p125 = scmp.eq.s32.totalorder %s124, 0
    %s127 = sadd.s32 %s126, 1
    %s128 = scalar_select %p125, %s126, %s127
    %p131 = pneg %p125
    %p132 = scmp.eq.s32.totalorder %s12, 1
    %p133 = por %p131, %p132
    %p134 = scmp.ne.s32.totalorder %s126, %s129
    %p135 = scmp.eq.s32.totalorder %s12, 0
    %p136 = por %p134, %p135
    %p137 = scmp.ne.s32.totalorder %s126, %s129
    %p138 = scmp.eq.s32.totalorder %s17, 1
    %p139 = por %p137, %p138
    %p140 = scmp.ne.s32.totalorder %s129, %s130
    %p141 = scmp.eq.s32.totalorder %s17, 0
    %p142 = por %p140, %p141
    %p143 = scmp.ne.s32.totalorder %s129, %s130
    %p144 = scmp.eq.s32.totalorder %s18, 1
    %p145 = por %p143, %p144
    %p147 = scmp.ne.s32.totalorder %s130, %s146
    %p148 = scmp.eq.s32.totalorder %s18, 0
    %p149 = por %p147, %p148
    %s151 = sadd.s32 %s150, 1
    %p154 = scmp.eq.s32.totalorder %s12, 1
    %p155 = scmp.ne.s32.totalorder %s150, %s152
    %p156 = scmp.eq.s32.totalorder %s12, 0
    %p157 = por %p155, %p156
    %p158 = scmp.ne.s32.totalorder %s150, %s152
    %p159 = scmp.eq.s32.totalorder %s17, 1
    %p160 = por %p158, %p159
    %p161 = scmp.ne.s32.totalorder %s152, %s153
    %p162 = scmp.eq.s32.totalorder %s17, 0
    %p163 = por %p161, %p162
    %p164 = scmp.ne.s32.totalorder %s152, %s153
    %p165 = scmp.eq.s32.totalorder %s18, 1
    %p166 = por %p164, %p165
    %p168 = scmp.ne.s32.totalorder %s153, %s167
    %p169 = scmp.eq.s32.totalorder %s18, 0
    %p170 = por %p168, %p169
    %s171 = ssub.s32 %s12, %s19
    %p172 = scmp.eq.s32.totalorder %s171, 0
    %s174 = sadd.s32 %s173, 1
    %s175 = scalar_select %p172, %s173, %s174
    %p178 = pneg %p172
    %p179 = scmp.eq.s32.totalorder %s12, 1
    %p180 = por %p178, %p179
    %p181 = scmp.ne.s32.totalorder %s173, %s176
    %p182 = scmp.eq.s32.totalorder %s12, 0
    %p183 = por %p181, %p182
    %p184 = scmp.ne.s32.totalorder %s173, %s176
    %p185 = scmp.eq.s32.totalorder %s17, 1
    %p186 = por %p184, %p185
    %p187 = scmp.ne.s32.totalorder %s176, %s177
    %p188 = scmp.eq.s32.totalorder %s17, 0
    %p189 = por %p187, %p188
    %p190 = scmp.ne.s32.totalorder %s176, %s177
    %p191 = scmp.eq.s32.totalorder %s18, 1
    %p192 = por %p190, %p191
    %p194 = scmp.ne.s32.totalorder %s177, %s193
    %p195 = scmp.eq.s32.totalorder %s18, 0
    %p196 = por %p194, %p195
    %p197 = scmp.le.s32.totalorder 1, %s12
    %p198 = scmp.lt.s32.totalorder %s12, 3
    %p199 = pnand %p197, %p198
    %p200 = pneg %p199
    // Predicated region
    $region9: #{encoder_layer_forward.4} parent=5 // pred_check
      _
    $region10: #{encoder_layer_forward.4} parent=5 // pred_check_branch
      %202 = sbr.rel (%p199) target = $region12
    $region11: #{encoder_layer_forward.4} parent=5 // pred_region
      %s203 = ssub.s32 %s12, 1
      // Predicated region
      $region13: #{encoder_layer_forward.4} parent=11 // pred_check
        %p204 = pneg %p163
      $region14: #{encoder_layer_forward.4} parent=11 // pred_check_branch
        %206 = sbr.rel (%p204) target = $region16
      $region15: #{encoder_layer_forward.4} parent=11 // pred_region
        _
      $region16: #{encoder_layer_forward.4} parent=11 // pred_fallthru
        _
    $region12: #{encoder_layer_forward.4} parent=5 // pred_fallthru
      _
    %p207 = scmp.lt.s32.totalorder %s12, 2
    // Predicated region
    $region17: #{encoder_layer_forward.4} parent=5 // pred_check
      %p208 = pneg %p207
    $region18: #{encoder_layer_forward.4} parent=5 // pred_check_branch
      %210 = sbr.rel (%p208) target = $region20
    $region19: #{encoder_layer_forward.4} parent=5 // pred_region
      // Predicated region
      $region21: #{encoder_layer_forward.4} parent=19 // pred_check
        %p211 = pneg %p32
      $region22: #{encoder_layer_forward.4} parent=19 // pred_check_branch
        %213 = sbr.rel (%p211) target = $region24
      $region23: #{encoder_layer_forward.4} parent=19 // pred_region
        %s214 = smul.u32 2, %s12
        %p215 = scmp.lt.s32.totalorder %s214, 3
        %s216 = scalar_select %p215, %s214, 3
        %s217 = smul.addr %s216, 2
        %s218 = smul.addr %s217, 4
        %s219 = scalar_lea.vmem %s0, %s218
        %s220 = smul.u32 2, %s12
      $region24: #{encoder_layer_forward.4} parent=19 // pred_fallthru
        _
      // Predicated region
      $region25: #{encoder_layer_forward.4} parent=19 // pred_check
        %p221 = pneg %p58
      $region26: #{encoder_layer_forward.4} parent=19 // pred_check_branch
        %223 = sbr.rel (%p221) target = $region28
      $region27: #{encoder_layer_forward.4} parent=19 // pred_region
        %s224 = smul.u32 2, %s12
        %p225 = scmp.lt.s32.totalorder %s224, 3
        %s226 = scalar_select %p225, %s224, 3
        %s227 = smul.addr %s226, 2
        %s228 = smul.addr %s227, 4
        %s229 = scalar_lea.vmem %s1, %s228
        %s230 = smul.u32 2, %s12
      $region28: #{encoder_layer_forward.4} parent=19 // pred_fallthru
        _
      // Predicated region
      $region29: #{encoder_layer_forward.4} parent=19 // pred_check
        %p231 = pneg %p84
      $region30: #{encoder_layer_forward.4} parent=19 // pred_check_branch
        %233 = sbr.rel (%p231) target = $region32
      $region31: #{encoder_layer_forward.4} parent=19 // pred_region
        %s234 = smul.u32 2, %s12
        %p235 = scmp.lt.s32.totalorder %s234, 3
        %s236 = scalar_select %p235, %s234, 3
        %s237 = smul.addr %s236, 2
        %s238 = smul.addr %s237, 4
        %s239 = scalar_lea.vmem %s2, %s238
        %s240 = smul.u32 2, %s12
      $region32: #{encoder_layer_forward.4} parent=19 // pred_fallthru
        _
      // Predicated region
      $region33: #{encoder_layer_forward.4} parent=19 // pred_check
        %p241 = pneg %p110
      $region34: #{encoder_layer_forward.4} parent=19 // pred_check_branch
        %243 = sbr.rel (%p241) target = $region36
      $region35: #{encoder_layer_forward.4} parent=19 // pred_region
        %s244 = smul.u32 2, %s12
        %p245 = scmp.lt.s32.totalorder %s244, 3
        %s246 = scalar_select %p245, %s244, 3
        %s247 = smul.addr %s246, 2
        %s248 = smul.addr %s247, 8
        %s249 = scalar_lea.vmem %s3, %s248
        %s250 = smul.u32 2, %s12
      $region36: #{encoder_layer_forward.4} parent=19 // pred_fallthru
        _
      // Predicated region
      $region37: #{encoder_layer_forward.4} parent=19 // pred_check
        %p251 = pneg %p136
      $region38: #{encoder_layer_forward.4} parent=19 // pred_check_branch
        %253 = sbr.rel (%p251) target = $region40
      $region39: #{encoder_layer_forward.4} parent=19 // pred_region
        %s254 = smul.u32 2, %s12
        %p255 = scmp.lt.s32.totalorder %s254, 3
        %s256 = scalar_select %p255, %s254, 3
        %s257 = scalar_lea.vmem %s4, %s256
        %s258 = smul.u32 2, %s12
      $region40: #{encoder_layer_forward.4} parent=19 // pred_fallthru
        _
    $region20: #{encoder_layer_forward.4} parent=5 // pred_fallthru
      _
    %p259 = scmp.le.s32.totalorder 1, %s12
    %p260 = scmp.lt.s32.totalorder %s12, 3
    %p261 = pnand %p259, %p260
    %p262 = pneg %p261
    // Predicated region
    $region41: #{encoder_layer_forward.4} parent=5 // pred_check
      _
    $region42: #{encoder_layer_forward.4} parent=5 // pred_check_branch
      %264 = sbr.rel (%p261) target = $region44
    $region43: #{encoder_layer_forward.4} parent=5 // pred_region
      %s265 = ssub.s32 %s12, 1
      %s266 = smul.u32 2, %s17
      %p267 = scmp.lt.s32.totalorder %s266, 3
      %s268 = scalar_select %p267, %s266, 3
      %s269 = smul.addr %s268, 2
      %s270 = smul.addr %s269, 4
      %s271 = scalar_lea.vmem %s0, %s270
      %p272 = pneg %p38
      %p273 = pneg %p35
      %s274 = smul.u32 2, %s17
      %p275 = scmp.lt.s32.totalorder %s274, 3
      %s276 = scalar_select %p275, %s274, 3
      %s277 = smul.addr %s276, 2
      %s278 = smul.addr %s277, 4
      %s279 = scalar_lea.vmem %s1, %s278
      %p280 = pneg %p64
      %p281 = pneg %p61
      %s282 = smul.u32 2, %s17
      %p283 = scmp.lt.s32.totalorder %s282, 3
      %s284 = scalar_select %p283, %s282, 3
      %s285 = smul.addr %s284, 2
      %s286 = smul.addr %s285, 4
      %s287 = scalar_lea.vmem %s2, %s286
      %p288 = pneg %p90
      %p289 = pneg %p87
      %s290 = smul.u32 2, %s17
      %p291 = scmp.lt.s32.totalorder %s290, 3
      %s292 = scalar_select %p291, %s290, 3
      %s293 = smul.addr %s292, 2
      %s294 = smul.addr %s293, 8
      %s295 = scalar_lea.vmem %s3, %s294
      %p296 = pneg %p116
      %p297 = pneg %p113
      %s298 = smul.u32 2, %s17
      %p299 = scmp.lt.s32.totalorder %s298, 3
      %s300 = scalar_select %p299, %s298, 3
      %s301 = scalar_lea.vmem %s4, %s300
      %p302 = pneg %p142
      %p303 = pneg %p139
      %p304 = pneg %p163
      %p305 = pneg %p160
      %p306 = pneg %p189
      %p307 = pneg %p186
      %s308 = smul.u32 2, %s17
      %p309 = scmp.lt.s32.totalorder %s308, 3
      %s310 = scalar_select %p309, %s308, 3
      %s311 = smul.addr %s310, 2
      %s312 = smul.addr %s311, 8
      %s313 = scalar_lea.vmem %s6, %s312
      %s314 = smul.u32 2, %s17
      %p315 = scmp.lt.s32.totalorder %s314, 3
      %s316 = scalar_select %p315, %s314, 3
      %s317 = smul.addr %s316, 2
      %s318 = smul.addr %s317, 4
      %s319 = scalar_lea.vmem %s0, %s318
      %s320 = smul.u32 2, %s17
      %s321 = smul.u32 2, %s17
      %p322 = scmp.lt.s32.totalorder %s321, 3
      %s323 = scalar_select %p322, %s321, 3
      %s324 = smul.addr %s323, 2
      %s325 = smul.addr %s324, 4
      %s326 = scalar_lea.vmem %s1, %s325
      %s327 = smul.u32 2, %s17
      %s328 = smul.u32 2, %s17
      %p329 = scmp.lt.s32.totalorder %s328, 3
      %s330 = scalar_select %p329, %s328, 3
      %s331 = smul.addr %s330, 2
      %s332 = smul.addr %s331, 4
      %s333 = scalar_lea.vmem %s2, %s332
      %s334 = smul.u32 2, %s17
      %s335 = smul.u32 2, %s17
      %p336 = scmp.lt.s32.totalorder %s335, 3
      %s337 = scalar_select %p336, %s335, 3
      %s338 = smul.addr %s337, 2
      %s339 = smul.addr %s338, 8
      %s340 = scalar_lea.vmem %s3, %s339
      %s341 = smul.u32 2, %s17
      %s342 = smul.u32 2, %s17
      %p343 = scmp.lt.s32.totalorder %s342, 3
      %s344 = scalar_select %p343, %s342, 3
      %s345 = scalar_lea.vmem %s4, %s344
      %s346 = smul.u32 2, %s17
      %s347 = smul.u32 2, %s17
      %p348 = scmp.lt.s32.totalorder %s347, 3
      %s349 = scalar_select %p348, %s347, 3
      %s350 = smul.addr %s349, 2
      %s351 = smul.addr %s350, 8
      %s352 = scalar_lea.vmem %s6, %s351
      %s353 = smul.u32 2, %s17
      %v359 = vld [vmem:[%s5] sm:$0xf]
      %v360 = vld [vmem:[%s5 + $0x4] sm:$0xf]
      %v361 = vlaneseq
      %v362 = vand.u32 %v361, 127
      %v363 = vlaneseq
      %v364 = vshrl.u32 %v363, 7
      %v365 = vadd.s32 %v364, 8
      loop: start=0, step=1, limit=2
      $region45: #{encoder_layer_forward.4} parent=43 // loop_pre_header
        _
      $region46: #{encoder_layer_forward.4} parent=43 // loop_header
        %s367 = sphi 0, %s371
        %p368 = scmp.ge.s32.totalorder %s367, 2
      $region47: #{encoder_layer_forward.4} parent=43 // loop_header_branch
        %370 = sbr.rel (%p368) target = $region51
      $region48: #{encoder_layer_forward.4} parent=43 // loop_body
        %s372 = smul.u32 %s367, 2
        %s373 = smul.addr %s372, 4
        %s374 = scalar_lea.vmem %s319, %s373
        %v375 = vld [vmem:[%s374] sm:$0xf]
        %v376 = vld [vmem:[%s374 + $0x4] sm:$0xf]
        %s377 = smul.addr %s372, 4
        %s378 = scalar_lea.vmem %s326, %s377
        %v379 = vld [vmem:[%s378] sm:$0xf]
        %v380 = vld [vmem:[%s378 + $0x4] sm:$0xf]
        %s381 = smul.addr %s372, 4
        %s382 = scalar_lea.vmem %s333, %s381
        %v383 = vld [vmem:[%s382] sm:$0xf]
        %v384 = vld [vmem:[%s382 + $0x4] sm:$0xf]
        %s385 = smul.u32 %s367, 16
        %s386 = scalar_lea.vmem %s340, %s385
        %v387 = vld [vmem:[%s386] sm:$0xff]
        %v388 = vld [vmem:[%s386 + $0x8] sm:$0x7f]
        %s389 = scalar_lea.vmem %s345, %s367
        %v390 = vld [vmem:[%s389] sm:$0x1]
        %v393 = vunpack.c.l.b16 %v375
        %v394 = vunpack.c.l.b16 %v376
        %v395 = vpack.c.b16 %v394, %v393
        %v398 = vunpack.c.l.b16 %v379
        %v399 = vunpack.c.l.b16 %v380
        %v400 = vpack.c.b16 %v399, %v398
        %vm401 = vcmask 261120
        %v403 = vsel %vm401, %v395, 0
        %v406 = vsel %vm401, %v400, 0
        %408 = vmatprep.subr.bf16.mxu0 0
        %409 = vmatpush1.bf16.xpose.msra.mxu0 0
        %410 = vmatprep.subr.bf16.mxu0 0
        %411 = vmatpush1.bf16.xpose.msra.mxu0 0
        %412 = vmatprep.subr.bf16.mxu0 0
        %413 = vmatpush1.bf16.xpose.msra.mxu0 0
        %414 = vmatprep.subr.bf16.mxu0 0
        %415 = vmatpush1.bf16.xpose.msra.mxu0 0
        %416 = vmatprep.subr.bf16.mxu0 0
        %417 = vmatpush1.bf16.xpose.msra.mxu0 0
        %418 = vmatprep.subr.bf16.mxu0 0
        %419 = vmatpush1.bf16.xpose.msra.mxu0 0
        %420 = vmatprep.subr.bf16.mxu0 0
        %421 = vmatpush1.bf16.xpose.msra.mxu0 0
        %422 = vmatprep.subr.bf16.mxu0 0
        %423 = vmatpush1.bf16.xpose.msra.mxu0 %v406
        %424 = vmatprep.subr.bf16.mxu0 0
        %425 = vmatpush2.bf16.xpose.msra.mxu0 0
        %426 = vmatprep.subr.bf16.mxu0 0
        %427 = vmatpush2.bf16.xpose.msra.mxu0 0
        %428 = vmatprep.subr.bf16.mxu0 0
        %429 = vmatpush2.bf16.xpose.msra.mxu0 0
        %430 = vmatprep.subr.bf16.mxu0 0
        %431 = vmatpush2.bf16.xpose.msra.mxu0 0
        %432 = vmatprep.subr.bf16.mxu0 0
        %433 = vmatpush2.bf16.xpose.msra.mxu0 0
        %434 = vmatprep.subr.bf16.mxu0 0
        %435 = vmatpush2.bf16.xpose.msra.mxu0 0
        %436 = vmatprep.subr.bf16.mxu0 0
        %437 = vmatpush2.bf16.xpose.msra.mxu0 0
        %438 = vmatprep.subr.bf16.mxu0 0
        %439 = vmatpush2.bf16.xpose.msra.mxu0 0
        %440 = vmatprep.mubr.bf16.mxu0 0
        %441 = vmatmul.mubr.bf16.gmra.mxu0 %v403
        %v442 = vpop.f32.mrf.mxu0
        %v443 = vadd.f32 0.0, %v442
        %v444 = vpop.f32.mrf.mxu0
        %v445 = vpop.f32.mrf.mxu0
        %v446 = vadd.f32 0.0, %v445
        %v447 = vpop.f32.mrf.mxu0
        %448 = vdwg.mxu0
        %v449 = vmul.f32 %v443, 0.17677669
        %v450 = vmul.f32 %v446, 0.17677669
        %451 = vset.pattern.permute.xlu0 0
        %452 = vperm.xlu0 %451, %v387
        %v453 = vpop.permute.xlu0 %452
        %454 = vset.pattern.permute.xlu0 0
        %455 = vperm.xlu0 %454, %v388
        %v456 = vpop.permute.xlu0 %455
        %vm457 = vcmp.gt.s32.totalorder %v362, %v453
        %vm458 = vcmp.gt.s32.totalorder %v362, %v456
        %v459 = vsel %vm457, -inf, %v449
        %v460 = vsel %vm458, -inf, %v450
        %vm461 = vcmask 130048
        %v462 = vsel %vm461, %v459, -inf
        %463 = vmax.xlane.f32.xlu0 %v462
        %v464 = vpop.xlane.xlu0 %463
        %vm465 = vcmask 129024
        %v466 = vsel %vm465, %v460, -inf
        %467 = vmax.xlane.f32.xlu0 %v466
        %v468 = vpop.xlane.xlu0 %467
        %v469 = vsub.f32 %v459, %v464
        %v470 = vsub.f32 %v460, %v468
        %v471 = vmul.f32 %v469, 1.442695
        %v472 = vpow.pop %v471
        %v473 = vmul.f32 %v470, 1.442695
        %v474 = vpow.pop %v473
        %v475 = vsel %vm461, %v472, 0.0
        %476 = vadd.xlane.f32.xlu0 %v475
        %v477 = vpop.xlane.xlu0 %476
        %v478 = vsel %vm465, %v474, 0.0
        %479 = vadd.xlane.f32.xlu0 %v478
        %v480 = vpop.xlane.xlu0 %479
        %v481 = vrcp.pop %v477
        %v482 = vrcp.pop %v480
        %v483 = vmul.f32 %v472, %v481
        %v484 = vmul.f32 %v474, %v482
        %v485 = vpack.c.bf16 %v484, %v483
        %v488 = vunpack.c.l.b16 %v383
        %v489 = vunpack.c.l.b16 %v384
        %v490 = vpack.c.b16 %v489, %v488
        %v493 = vsel %vm461, %v485, 0
        %495 = vmatprep.subr.bf16.mxu0 0
        %496 = vmatpush1.bf16.msra.mxu0 0
        %497 = vmatprep.subr.bf16.mxu0 0
        %498 = vmatpush1.bf16.msra.mxu0 0
        %499 = vmatprep.subr.bf16.mxu0 0
        %500 = vmatpush1.bf16.msra.mxu0 0
        %501 = vmatprep.subr.bf16.mxu0 0
        %502 = vmatpush1.bf16.msra.mxu0 0
        %503 = vmatprep.subr.bf16.mxu0 0
        %504 = vmatpush1.bf16.msra.mxu0 0
        %505 = vmatprep.subr.bf16.mxu0 0
        %506 = vmatpush1.bf16.msra.mxu0 0
        %507 = vmatprep.subr.bf16.mxu0 0
        %508 = vmatpush1.bf16.msra.mxu0 0
        %509 = vmatprep.subr.bf16.mxu0 0
        %510 = vmatpush1.bf16.msra.mxu0 %v490
        %511 = vmatprep.subr.bf16.mxu0 0
        %512 = vmatpush2.bf16.msra.mxu0 0
        %513 = vmatprep.subr.bf16.mxu0 0
        %514 = vmatpush2.bf16.msra.mxu0 0
        %515 = vmatprep.subr.bf16.mxu0 0
        %516 = vmatpush2.bf16.msra.mxu0 0
        %517 = vmatprep.subr.bf16.mxu0 0
        %518 = vmatpush2.bf16.msra.mxu0 0
        %519 = vmatprep.subr.bf16.mxu0 0
        %520 = vmatpush2.bf16.msra.mxu0 0
        %521 = vmatprep.subr.bf16.mxu0 0
        %522 = vmatpush2.bf16.msra.mxu0 0
        %523 = vmatprep.subr.bf16.mxu0 0
        %524 = vmatpush2.bf16.msra.mxu0 0
        %525 = vmatprep.subr.bf16.mxu0 0
        %526 = vmatpush2.bf16.msra.mxu0 0
        %527 = vmatprep.mubr.bf16.mxu0 0
        %528 = vmatmul.mubr.bf16.gmra.mxu0 %v493
        %v529 = vpop.f32.mrf.mxu0
        %v530 = vadd.f32 0.0, %v529
        %v531 = vpop.f32.mrf.mxu0
        %v532 = vpop.f32.mrf.mxu0
        %v533 = vadd.f32 0.0, %v532
        %v534 = vpop.f32.mrf.mxu0
        %535 = vdwg.mxu0
        %v538 = vunpack.c.l.b16 %v359
        %v539 = vunpack.c.l.b16 %v360
        %v540 = vpack.c.b16 %v539, %v538
        %v542 = vsel %vm461, %v540, 0
        %544 = vmatprep.subr.bf16.mxu0 0
        %545 = vmatpush1.bf16.msra.mxu0 0
        %546 = vmatprep.subr.bf16.mxu0 0
        %547 = vmatpush1.bf16.msra.mxu0 0
        %548 = vmatprep.subr.bf16.mxu0 0
        %549 = vmatpush1.bf16.msra.mxu0 0
        %550 = vmatprep.subr.bf16.mxu0 0
        %551 = vmatpush1.bf16.msra.mxu0 0
        %552 = vmatprep.subr.bf16.mxu0 0
        %553 = vmatpush1.bf16.msra.mxu0 0
        %554 = vmatprep.subr.bf16.mxu0 0
        %555 = vmatpush1.bf16.msra.mxu0 0
        %556 = vmatprep.subr.bf16.mxu0 0
        %557 = vmatpush1.bf16.msra.mxu0 0
        %558 = vmatprep.subr.bf16.mxu0 0
        %559 = vmatpush1.bf16.msra.mxu0 %v490
        %560 = vmatprep.subr.bf16.mxu0 0
        %561 = vmatpush2.bf16.msra.mxu0 0
        %562 = vmatprep.subr.bf16.mxu0 0
        %563 = vmatpush2.bf16.msra.mxu0 0
        %564 = vmatprep.subr.bf16.mxu0 0
        %565 = vmatpush2.bf16.msra.mxu0 0
        %566 = vmatprep.subr.bf16.mxu0 0
        %567 = vmatpush2.bf16.msra.mxu0 0
        %568 = vmatprep.subr.bf16.mxu0 0
        %569 = vmatpush2.bf16.msra.mxu0 0
        %570 = vmatprep.subr.bf16.mxu0 0
        %571 = vmatpush2.bf16.msra.mxu0 0
        %572 = vmatprep.subr.bf16.mxu0 0
        %573 = vmatpush2.bf16.msra.mxu0 0
        %574 = vmatprep.subr.bf16.mxu0 0
        %575 = vmatpush2.bf16.msra.mxu0 0
        %576 = vmatprep.mubr.bf16.mxu0 0
        %577 = vmatmul.mubr.bf16.gmra.mxu0 %v542
        %v578 = vpop.f32.mrf.mxu0
        %v579 = vadd.f32 0.0, %v578
        %v580 = vpop.f32.mrf.mxu0
        %v581 = vpop.f32.mrf.mxu0
        %v582 = vadd.f32 0.0, %v581
        %v583 = vpop.f32.mrf.mxu0
        %584 = vdwg.mxu0
        %v585 = vlaneseq
        %v586 = vshrl.u32 %v585, 7
        %v587 = vsub.s32 0, %v586
        %v588 = vrot.slane %v390, %v587
        %vm589 = vcmp.eq.s32.totalorder %v364, %v588
        %vm590 = vcmp.eq.s32.totalorder %v365, %v588
        %v591 = vsel %vm589, 1, 0
        %v592 = vsel %vm590, 1, 0
        %v593 = vcvt.s32.f32 %v591
        %v594 = vcvt.s32.f32 %v592
        %v595 = vpack.c.bf16 %v594, %v593
        %v596 = vpack.c.bf16 %v533, %v530
        %vm597 = vcmask 121856
        %v599 = vsel %vm597, %v595, 0
        %vm601 = vcmask 1046528
        %vm602 = vcmask 1047552
        %v603 = vsel %vm601, 4294967295, 65535
        %v604 = vsel %vm602, %v603, 0
        %v606 = vand.u32 %v596, %v604
        %608 = vmatprep.subr.bf16.mxu0 0
        %609 = vmatpush1.bf16.msra.mxu0 0
        %610 = vmatprep.subr.bf16.mxu0 0
        %611 = vmatpush1.bf16.msra.mxu0 0
        %612 = vmatprep.subr.bf16.mxu0 0
        %613 = vmatpush1.bf16.msra.mxu0 0
        %614 = vmatprep.subr.bf16.mxu0 0
        %615 = vmatpush1.bf16.msra.mxu0 0
        %616 = vmatprep.subr.bf16.mxu0 0
        %617 = vmatpush1.bf16.msra.mxu0 0
        %618 = vmatprep.subr.bf16.mxu0 0
        %619 = vmatpush1.bf16.msra.mxu0 0
        %620 = vmatprep.subr.bf16.mxu0 0
        %621 = vmatpush1.bf16.msra.mxu0 0
        %622 = vmatprep.subr.bf16.mxu0 0
        %623 = vmatpush1.bf16.msra.mxu0 %v606
        %624 = vmatprep.subr.bf16.mxu0 0
        %625 = vmatpush2.bf16.msra.mxu0 0
        %626 = vmatprep.subr.bf16.mxu0 0
        %627 = vmatpush2.bf16.msra.mxu0 0
        %628 = vmatprep.subr.bf16.mxu0 0
        %629 = vmatpush2.bf16.msra.mxu0 0
        %630 = vmatprep.subr.bf16.mxu0 0
        %631 = vmatpush2.bf16.msra.mxu0 0
        %632 = vmatprep.subr.bf16.mxu0 0
        %633 = vmatpush2.bf16.msra.mxu0 0
        %634 = vmatprep.subr.bf16.mxu0 0
        %635 = vmatpush2.bf16.msra.mxu0 0
        %636 = vmatprep.subr.bf16.mxu0 0
        %637 = vmatpush2.bf16.msra.mxu0 0
        %638 = vmatprep.subr.bf16.mxu0 0
        %639 = vmatpush2.bf16.msra.mxu0 0
        %640 = vmatprep.mubr.bf16.mxu0 0
        %641 = vmatmul.mubr.bf16.gmra.mxu0 %v599
        %v642 = vpop.f32.mrf.mxu0
        %v643 = vadd.f32 0.0, %v642
        %v644 = vpop.f32.mrf.mxu0
        %v645 = vpop.f32.mrf.mxu0
        %v646 = vadd.f32 0.0, %v645
        %v647 = vpop.f32.mrf.mxu0
        %648 = vdwg.mxu0
        %v650 = vsel %vm597, %v595, 4286644096
        %652 = vmax.xlane.bf16.xlu0 %v650
        %v653 = vpop.xlane.xlu0 %652
        %vm654 = vcmp.gt.bf16.partialorder %v653, 1056980736
        %v655 = vsel %vm654, 65537, 0
        %v657 = vunpack.c.l.s4 839922192
        %v658 = vunpack.c.0.s8 %v657
        %v659 = vlaneseq
        %v660 = vshrl.u32 %v659, 7
        %v661 = vsub.s32 %v658, %v660
        %v662 = vrot.slane %v655, %v661
        %v664 = vunpack.c.l.s4 1985246804
        %v665 = vunpack.c.0.s8 %v664
        %v666 = vlaneseq
        %v667 = vshrl.u32 %v666, 7
        %v668 = vsub.s32 %v665, %v667
        %v669 = vrot.slane %v655, %v668
        %vm670 = vcmp.ne.s16.totalorder %v662, 0
        %vm671 = vcmp.ne.s16.totalorder %v669, 0
        %v672 = vsel %vm670, 65537, 0
        %v673 = vsel %vm671, 65537, 0
        %v674 = vunpack.c.l.b16 %v672
        %v675 = vunpack.c.l.b16 %v673
        %vm676 = vcmp.ne.s32.totalorder %v674, 0
        %vm677 = vcmp.ne.s32.totalorder %v675, 0
        %v678 = vsel %vm676, 1, 0
        %v679 = vsel %vm677, 1, 0
        %680 = vset.pattern.permute.xlu0 0
        %681 = vperm.xlu0 %680, %v678
        %v682 = vpop.permute.xlu0 %681
        %683 = vset.pattern.permute.xlu0 0
        %684 = vperm.xlu0 %683, %v679
        %v685 = vpop.permute.xlu0 %684
        %vm686 = vcmp.eq.s32.totalorder %v682, 1
        %vm687 = vcmp.eq.s32.totalorder %v685, 1
        %v688 = vsel %vm686, %v643, %v579
        %v689 = vsel %vm687, %v646, %v582
        %s690 = scalar_lea.vmem %s352, %s385
        %691 = vst.msk [vmem:[%s690] sm:$0xff] %vm401, %v688
        %692 = vst.msk [vmem:[%s690 + $0x8] sm:$0xff] %vm401, %v689
      $region49: #{encoder_layer_forward.4} parent=43 // loop_footer
        %s371 = sadd.s32 1, %s367
      $region50: #{encoder_layer_forward.4} parent=43 // loop_footer_branch
        %366 = sbr.rel target = $region46
      $region51: #{encoder_layer_forward.4} parent=43 // loop_exit
        _
      %s693 = smul.u32 2, %s17
      %p694 = scmp.lt.s32.totalorder %s693, 3
      %s695 = scalar_select %p694, %s693, 3
      %s696 = smul.addr %s695, 2
      %s697 = smul.addr %s696, 8
      %s698 = scalar_lea.vmem %s6, %s697
      // Predicated region
      $region52: #{encoder_layer_forward.4} parent=43 // pred_check
        %p699 = pneg %p186
      $region53: #{encoder_layer_forward.4} parent=43 // pred_check_branch
        %701 = sbr.rel (%p699) target = $region55
      $region54: #{encoder_layer_forward.4} parent=43 // pred_region
        %s702 = smul.u32 2, %s17
      $region55: #{encoder_layer_forward.4} parent=43 // pred_fallthru
        _
    $region44: #{encoder_layer_forward.4} parent=5 // pred_fallthru
      _
    %p703 = scmp.le.s32.totalorder 2, %s12
    // Predicated region
    $region56: #{encoder_layer_forward.4} parent=5 // pred_check
      %p704 = pneg %p703
    $region57: #{encoder_layer_forward.4} parent=5 // pred_check_branch
      %706 = sbr.rel (%p704) target = $region59
    $region58: #{encoder_layer_forward.4} parent=5 // pred_region
      %s707 = ssub.s32 %s12, 2
      // Predicated region
      $region60: #{encoder_layer_forward.4} parent=58 // pred_check
        %p708 = pneg %p192
      $region61: #{encoder_layer_forward.4} parent=58 // pred_check_branch
        %710 = sbr.rel (%p708) target = $region63
      $region62: #{encoder_layer_forward.4} parent=58 // pred_region
        %s711 = smul.u32 2, %s18
        %p712 = scmp.lt.s32.totalorder %s711, 3
        %s713 = scalar_select %p712, %s711, 3
        %s714 = smul.addr %s713, 2
        %s715 = smul.addr %s714, 8
        %s716 = scalar_lea.vmem %s6, %s715
      $region63: #{encoder_layer_forward.4} parent=58 // pred_fallthru
        _
    $region59: #{encoder_layer_forward.4} parent=5 // pred_fallthru
      _
  $region6: #{encoder_layer_forward.4} parent=0 // loop_footer
    %s16 = sadd.s32 1, %s12
  $region7: #{encoder_layer_forward.4} parent=0 // loop_footer_branch
    %11 = sbr.rel target = $region3
  $region8: #{encoder_layer_forward.4} parent=0 // loop_exit
    _

// kernel: encoder_layer_forward.5
$region0: #{encoder_layer_forward.5}
  #allocation0 [shape = 'u32[]', space=smem, size = 0x4, offset = 0x4, fixed_abs, tag = 'smem constant byte address 0x4 - core index']
  #allocation1 [shape = 'u32[144,128]{1,0:T(1,128)}', space=vmem, size = 0x12000, scoped, tag = 'internal scratch']
  %s0 = inlined_call_operand.vmem [shape: f32[32,64], index: 0, kind: input, shape index: {}]
  %s1 = inlined_call_operand.vmem [shape: f32[32,64], index: 1, kind: input, shape index: {}]
  %s2 = inlined_call_operand.vmem [shape: bf16[64,256], index: 2, kind: input, shape index: {}]
  %s3 = inlined_call_operand.vmem [shape: f32[1,256], index: 3, kind: input, shape index: {}]
  %s4 = inlined_call_operand.vmem [shape: bf16[256,64], index: 4, kind: input, shape index: {}]
  %s5 = inlined_call_operand.vmem [shape: f32[1,64], index: 5, kind: input, shape index: {}]
  %s6 = inlined_call_operand.vmem [shape: f32[1,64], index: 6, kind: input, shape index: {}]
  %s7 = inlined_call_operand.vmem [shape: f32[1,64], index: 7, kind: input, shape index: {}]
  %s8 = inlined_call_operand.vmem [shape: f32[1,64], index: 8, kind: input, shape index: {}]
  %s9 = inlined_call_operand.vmem [shape: f32[1,64], index: 9, kind: input, shape index: {}]
  %s10 = inlined_call_operand.hbm [shape: f32[32,64], index: 10, kind: output, shape index: {}]
  %s11 = sld [smem:[#allocation0]]
  $region50: #{encoder_layer_forward.5} parent=0
    _
  %s13 = ssub.s32 1, %s11
  %s14 = scalar_select 0, %s13, %s11
  $region1: #{encoder_layer_forward.5} parent=0
    #allocation2 [shape = 'u8[16384]{0}', space=vmem, size = 0x4000, scoped, tag = 'output window, operand 0, single buffered']
    #allocation3 [shape = 's32[1]{0}', space=sflag, size = 0x4, scoped, tag = 'scoped memory for encoder_layer_forward.5']
    %15 = vsyncpa [#allocation3], 0
    // Predicated region
    $region2: #{encoder_layer_forward.5} parent=1 // pred_check
      _
    $region3: #{encoder_layer_forward.5} parent=1 // pred_check_branch
      %17 = sbr.rel (0) target = $region5
    $region4: #{encoder_layer_forward.5} parent=1 // pred_region
      _
    $region5: #{encoder_layer_forward.5} parent=1 // pred_fallthru
      _
    // Predicated region
    $region6: #{encoder_layer_forward.5} parent=1 // pred_check
      _
    $region7: #{encoder_layer_forward.5} parent=1 // pred_check_branch
      %19 = sbr.rel (0) target = $region9
    $region8: #{encoder_layer_forward.5} parent=1 // pred_region
      _
    $region9: #{encoder_layer_forward.5} parent=1 // pred_fallthru
      _
    // Predicated region
    $region10: #{encoder_layer_forward.5} parent=1 // pred_check
      _
    $region11: #{encoder_layer_forward.5} parent=1 // pred_check_branch
      %21 = sbr.rel (0) target = $region13
    $region12: #{encoder_layer_forward.5} parent=1 // pred_region
      _
    $region13: #{encoder_layer_forward.5} parent=1 // pred_fallthru
      _
    // Predicated region
    $region14: #{encoder_layer_forward.5} parent=1 // pred_check
      _
    $region15: #{encoder_layer_forward.5} parent=1 // pred_check_branch
      %23 = sbr.rel (0) target = $region17
    $region16: #{encoder_layer_forward.5} parent=1 // pred_region
      _
    $region17: #{encoder_layer_forward.5} parent=1 // pred_fallthru
      _
    // Predicated region
    $region18: #{encoder_layer_forward.5} parent=1 // pred_check
      _
    $region19: #{encoder_layer_forward.5} parent=1 // pred_check_branch
      %25 = sbr.rel (0) target = $region21
    $region20: #{encoder_layer_forward.5} parent=1 // pred_region
      _
    $region21: #{encoder_layer_forward.5} parent=1 // pred_fallthru
      _
    // Predicated region
    $region22: #{encoder_layer_forward.5} parent=1 // pred_check
      _
    $region23: #{encoder_layer_forward.5} parent=1 // pred_check_branch
      %27 = sbr.rel (0) target = $region25
    $region24: #{encoder_layer_forward.5} parent=1 // pred_region
      _
    $region25: #{encoder_layer_forward.5} parent=1 // pred_fallthru
      _
    // Predicated region
    $region26: #{encoder_layer_forward.5} parent=1 // pred_check
      _
    $region27: #{encoder_layer_forward.5} parent=1 // pred_check_branch
      %29 = sbr.rel (0) target = $region29
    $region28: #{encoder_layer_forward.5} parent=1 // pred_region
      _
    $region29: #{encoder_layer_forward.5} parent=1 // pred_fallthru
      _
    // Predicated region
    $region30: #{encoder_layer_forward.5} parent=1 // pred_check
      _
    $region31: #{encoder_layer_forward.5} parent=1 // pred_check_branch
      %31 = sbr.rel (0) target = $region33
    $region32: #{encoder_layer_forward.5} parent=1 // pred_region
      _
    $region33: #{encoder_layer_forward.5} parent=1 // pred_fallthru
      _
    // Predicated region
    $region34: #{encoder_layer_forward.5} parent=1 // pred_check
      _
    $region35: #{encoder_layer_forward.5} parent=1 // pred_check_branch
      %33 = sbr.rel (0) target = $region37
    $region36: #{encoder_layer_forward.5} parent=1 // pred_region
      _
    $region37: #{encoder_layer_forward.5} parent=1 // pred_fallthru
      _
    // Predicated region
    $region38: #{encoder_layer_forward.5} parent=1 // pred_check
      _
    $region39: #{encoder_layer_forward.5} parent=1 // pred_check_branch
      %35 = sbr.rel (0) target = $region41
    $region40: #{encoder_layer_forward.5} parent=1 // pred_region
      _
    $region41: #{encoder_layer_forward.5} parent=1 // pred_fallthru
      _
    %v37 = vld [vmem:[%s0] sm:$0xff]
    %v38 = vld [vmem:[%s0 + $0x8] sm:$0xff]
    %v39 = vld [vmem:[%s0 + $0x10] sm:$0xff]
    %v40 = vld [vmem:[%s0 + $0x18] sm:$0xff]
    %v41 = vld [vmem:[%s1] sm:$0xff]
    %v42 = vld [vmem:[%s1 + $0x8] sm:$0xff]
    %v43 = vld [vmem:[%s1 + $0x10] sm:$0xff]
    %v44 = vld [vmem:[%s1 + $0x18] sm:$0xff]
    %v45 = vadd.f32 %v37, %v41
    %v46 = vadd.f32 %v38, %v42
    %v47 = vadd.f32 %v39, %v43
    %v48 = vadd.f32 %v40, %v44
    %vm49 = vcmask 523264
    %v50 = vsel %vm49, %v45, 0.0
    %51 = vadd.xlane.f32.xlu0 %v50
    %v52 = vpop.xlane.xlu0 %51
    %v53 = vsel %vm49, %v46, 0.0
    %54 = vadd.xlane.f32.xlu0 %v53
    %v55 = vpop.xlane.xlu0 %54
    %v56 = vsel %vm49, %v47, 0.0
    %57 = vadd.xlane.f32.xlu0 %v56
    %v58 = vpop.xlane.xlu0 %57
    %v59 = vsel %vm49, %v48, 0.0
    %60 = vadd.xlane.f32.xlu0 %v59
    %v61 = vpop.xlane.xlu0 %60
    %v62 = vrcp.pop 64.0
    %v63 = vmul.f32 %v52, %v62
    %v64 = vmul.f32 %v55, %v62
    %v65 = vmul.f32 %v58, %v62
    %v66 = vmul.f32 %v61, %v62
    %v67 = vsub.f32 %v45, %v63
    %v68 = vsub.f32 %v46, %v64
    %v69 = vsub.f32 %v47, %v65
    %v70 = vsub.f32 %v48, %v66
    %v71 = vmul.f32 %v67, %v67
    %v72 = vmul.f32 %v68, %v68
    %v73 = vmul.f32 %v69, %v69
    %v74 = vmul.f32 %v70, %v70
    %v75 = vsel %vm49, %v71, 0.0
    %76 = vadd.xlane.f32.xlu0 %v75
    %v77 = vpop.xlane.xlu0 %76
    %v78 = vsel %vm49, %v72, 0.0
    %79 = vadd.xlane.f32.xlu0 %v78
    %v80 = vpop.xlane.xlu0 %79
    %v81 = vsel %vm49, %v73, 0.0
    %82 = vadd.xlane.f32.xlu0 %v81
    %v83 = vpop.xlane.xlu0 %82
    %v84 = vsel %vm49, %v74, 0.0
    %85 = vadd.xlane.f32.xlu0 %v84
    %v86 = vpop.xlane.xlu0 %85
    %v87 = vmul.f32 %v77, %v62
    %v88 = vmul.f32 %v80, %v62
    %v89 = vmul.f32 %v83, %v62
    %v90 = vmul.f32 %v86, %v62
    %v91 = vadd.f32 %v87, 1e-05
    %v92 = vadd.f32 %v88, 1e-05
    %v93 = vadd.f32 %v89, 1e-05
    %v94 = vadd.f32 %v90, 1e-05
    %v95 = vrsqrt.pop %v91
    %v96 = vrsqrt.pop %v92
    %v97 = vrsqrt.pop %v93
    %v98 = vrsqrt.pop %v94
    %v99 = vmul.f32 %v67, %v95
    %v100 = vmul.f32 %v68, %v96
    %v101 = vmul.f32 %v69, %v97
    %v102 = vmul.f32 %v70, %v98
    %v103 = vld [vmem:[%s6] sm:$0x1]
    %v105 = vlaneseq
    %v106 = vshrl.u32 %v105, 7
    %v107 = vsub.s32 0, %v106
    %v108 = vrot.slane %v103, %v107
    %v110 = vmul.f32 %v99, %v108
    %v111 = vmul.f32 %v100, %v108
    %v112 = vmul.f32 %v101, %v108
    %v113 = vmul.f32 %v102, %v108
    %v114 = vld [vmem:[%s7] sm:$0x1]
    %v116 = vlaneseq
    %v117 = vshrl.u32 %v116, 7
    %v118 = vsub.s32 0, %v117
    %v119 = vrot.slane %v114, %v118
    %v121 = vadd.f32 %v110, %v119
    %v122 = vadd.f32 %v111, %v119
    %v123 = vadd.f32 %v112, %v119
    %v124 = vadd.f32 %v113, %v119
    %v125 = vpack.c.bf16 %v122, %v121
    %v126 = vpack.c.bf16 %v124, %v123
    %v127 = vld [vmem:[%s2] sm:$0xff]
    %v128 = vld [vmem:[%s2 + $0x8] sm:$0xff]
    %v129 = vld [vmem:[%s2 + $0x10] sm:$0xff]
    %v130 = vld [vmem:[%s2 + $0x18] sm:$0xff]
    %v131 = vld [vmem:[%s2 + $0x20] sm:$0xff]
    %v132 = vld [vmem:[%s2 + $0x28] sm:$0xff]
    %v133 = vld [vmem:[%s2 + $0x30] sm:$0xff]
    %v134 = vld [vmem:[%s2 + $0x38] sm:$0xff]
    %v135 = vld [vmem:[%s3] sm:$0x3]
    %v137 = vlaneseq
    %v138 = vshrl.u32 %v137, 7
    %v139 = vsub.s32 0, %v138
    %v140 = vrot.slane %v135, %v139
    %v141 = vlaneseq
    %v142 = vshrl.u32 %v141, 7
    %v143 = vsub.s32 1, %v142
    %v144 = vrot.slane %v135, %v143
    %v155 = vunpack.c.l.b16 %v127
    %v156 = vunpack.c.h.b16 %v127
    %v157 = vunpack.c.l.b16 %v128
    %v158 = vunpack.c.h.b16 %v128
    %v159 = vunpack.c.l.b16 %v129
    %v160 = vunpack.c.h.b16 %v129
    %v161 = vunpack.c.l.b16 %v130
    %v162 = vunpack.c.h.b16 %v130
    %v163 = vunpack.c.l.b16 %v131
    %v164 = vunpack.c.h.b16 %v131
    %v165 = vunpack.c.l.b16 %v132
    %v166 = vunpack.c.h.b16 %v132
    %v167 = vunpack.c.l.b16 %v133
    %v168 = vunpack.c.h.b16 %v133
    %v169 = vunpack.c.l.b16 %v134
    %v170 = vunpack.c.h.b16 %v134
    %v171 = vpack.c.b16 %v157, %v155
    %v172 = vpack.c.b16 %v158, %v156
    %v173 = vpack.c.b16 %v161, %v159
    %v174 = vpack.c.b16 %v162, %v160
    %v175 = vpack.c.b16 %v165, %v163
    %v176 = vpack.c.b16 %v166, %v164
    %v177 = vpack.c.b16 %v169, %v167
    %v178 = vpack.c.b16 %v170, %v168
    %v188 = vsel %vm49, %v125, 0
    %v191 = vsel %vm49, %v126, 0
    %193 = vmatprep.subr.bf16.mxu0 0
    %194 = vmatpush1.bf16.msra.mxu0 0
    %195 = vmatprep.subr.bf16.mxu0 0
    %196 = vmatpush1.bf16.msra.mxu0 0
    %197 = vmatprep.subr.bf16.mxu0 0
    %198 = vmatpush1.bf16.msra.mxu0 0
    %199 = vmatprep.subr.bf16.mxu0 0
    %200 = vmatpush1.bf16.msra.mxu0 0
    %201 = vmatprep.subr.bf16.mxu0 %v178
    %202 = vmatpush1.bf16.msra.mxu0 %v177
    %203 = vmatprep.subr.bf16.mxu0 %v176
    %204 = vmatpush1.bf16.msra.mxu0 %v175
    %205 = vmatprep.subr.bf16.mxu0 %v174
    %206 = vmatpush1.bf16.msra.mxu0 %v173
    %207 = vmatprep.subr.bf16.mxu0 %v172
    %208 = vmatpush1.bf16.msra.mxu0 %v171
    %209 = vmatprep.subr.bf16.mxu0 0
    %210 = vmatpush2.bf16.msra.mxu0 0
    %211 = vmatprep.subr.bf16.mxu0 0
    %212 = vmatpush2.bf16.msra.mxu0 0
    %213 = vmatprep.subr.bf16.mxu0 0
    %214 = vmatpush2.bf16.msra.mxu0 0
    %215 = vmatprep.subr.bf16.mxu0 0
    %216 = vmatpush2.bf16.msra.mxu0 0
    %217 = vmatprep.subr.bf16.mxu0 0
    %218 = vmatpush2.bf16.msra.mxu0 0
    %219 = vmatprep.subr.bf16.mxu0 0
    %220 = vmatpush2.bf16.msra.mxu0 0
    %221 = vmatprep.subr.bf16.mxu0 0
    %222 = vmatpush2.bf16.msra.mxu0 0
    %223 = vmatprep.subr.bf16.mxu0 0
    %224 = vmatpush2.bf16.msra.mxu0 0
    %225 = vmatprep.mubr.bf16.mxu0 0
    %226 = vmatmul.mubr.bf16.gmra.mxu0 %v188
    %v227 = vpop.f32.mrf.mxu0
    %v228 = vadd.f32 %v140, %v227
    %v229 = vpop.f32.mrf.mxu0
    %v230 = vadd.f32 %v144, %v229
    %v231 = vpop.f32.mrf.mxu0
    %v232 = vadd.f32 %v140, %v231
    %v233 = vpop.f32.mrf.mxu0
    %v234 = vadd.f32 %v144, %v233
    %235 = vmatprep.mubr.bf16.mxu0 0
    %236 = vmatmul.mubr.bf16.gmra.mxu0 %v191
    %v237 = vpop.f32.mrf.mxu0
    %v238 = vadd.f32 %v140, %v237
    %v239 = vpop.f32.mrf.mxu0
    %v240 = vadd.f32 %v144, %v239
    %v241 = vpop.f32.mrf.mxu0
    %v242 = vadd.f32 %v140, %v241
    %v243 = vpop.f32.mrf.mxu0
    %v244 = vadd.f32 %v144, %v243
    %245 = vdwg.mxu0
    %v246 = vmax.f32 %v228, 0.0
    %v247 = vmax.f32 %v230, 0.0
    %v248 = vmax.f32 %v232, 0.0
    %v249 = vmax.f32 %v234, 0.0
    %v250 = vmax.f32 %v238, 0.0
    %v251 = vmax.f32 %v240, 0.0
    %v252 = vmax.f32 %v242, 0.0
    %v253 = vmax.f32 %v244, 0.0
    %v254 = vpack.c.bf16 %v248, %v246
    %v255 = vpack.c.bf16 %v249, %v247
    %v256 = vpack.c.bf16 %v252, %v250
    %v257 = vpack.c.bf16 %v253, %v251
    %v258 = vld [vmem:[%s4] sm:$0xf]
    %v259 = vld [vmem:[%s4 + $0x4] sm:$0xf]
    %v260 = vld [vmem:[%s4 + $0x8] sm:$0xf]
    %v261 = vld [vmem:[%s4 + $0xc] sm:$0xf]
    %v262 = vld [vmem:[%s4 + $0x10] sm:$0xf]
    %v263 = vld [vmem:[%s4 + $0x14] sm:$0xf]
    %v264 = vld [vmem:[%s4 + $0x18] sm:$0xf]
    %v265 = vld [vmem:[%s4 + $0x1c] sm:$0xf]
    %v266 = vld [vmem:[%s4 + $0x20] sm:$0xf]
    %v267 = vld [vmem:[%s4 + $0x24] sm:$0xf]
    %v268 = vld [vmem:[%s4 + $0x28] sm:$0xf]
    %v269 = vld [vmem:[%s4 + $0x2c] sm:$0xf]
    %v270 = vld [vmem:[%s4 + $0x30] sm:$0xf]
    %v271 = vld [vmem:[%s4 + $0x34] sm:$0xf]
    %v272 = vld [vmem:[%s4 + $0x38] sm:$0xf]
    %v273 = vld [vmem:[%s4 + $0x3c] sm:$0xf]
    %v274 = vld [vmem:[%s4 + $0x40] sm:$0xf]
    %v275 = vld [vmem:[%s4 + $0x44] sm:$0xf]
    %v276 = vld [vmem:[%s4 + $0x48] sm:$0xf]
    %v277 = vld [vmem:[%s4 + $0x4c] sm:$0xf]
    %v278 = vld [vmem:[%s4 + $0x50] sm:$0xf]
    %v279 = vld [vmem:[%s4 + $0x54] sm:$0xf]
    %v280 = vld [vmem:[%s4 + $0x58] sm:$0xf]
    %v281 = vld [vmem:[%s4 + $0x5c] sm:$0xf]
    %v282 = vld [vmem:[%s4 + $0x60] sm:$0xf]
    %v283 = vld [vmem:[%s4 + $0x64] sm:$0xf]
    %v284 = vld [vmem:[%s4 + $0x68] sm:$0xf]
    %v285 = vld [vmem:[%s4 + $0x6c] sm:$0xf]
    %v286 = vld [vmem:[%s4 + $0x70] sm:$0xf]
    %v287 = vld [vmem:[%s4 + $0x74] sm:$0xf]
    %v288 = vld [vmem:[%s4 + $0x78] sm:$0xf]
    %v289 = vld [vmem:[%s4 + $0x7c] sm:$0xf]
    %v290 = vld [vmem:[%s5] sm:$0x1]
    %v292 = vlaneseq
    %v293 = vshrl.u32 %v292, 7
    %v294 = vsub.s32 0, %v293
    %v295 = vrot.slane %v290, %v294
    %v329 = vunpack.c.l.b16 %v258
    %v330 = vunpack.c.l.b16 %v259
    %v331 = vunpack.c.l.b16 %v260
    %v332 = vunpack.c.l.b16 %v261
    %v333 = vunpack.c.l.b16 %v262
    %v334 = vunpack.c.l.b16 %v263
    %v335 = vunpack.c.l.b16 %v264
    %v336 = vunpack.c.l.b16 %v265
    %v337 = vunpack.c.l.b16 %v266
    %v338 = vunpack.c.l.b16 %v267
    %v339 = vunpack.c.l.b16 %v268
    %v340 = vunpack.c.l.b16 %v269
    %v341 = vunpack.c.l.b16 %v270
    %v342 = vunpack.c.l.b16 %v271
    %v343 = vunpack.c.l.b16 %v272
    %v344 = vunpack.c.l.b16 %v273
    %v345 = vunpack.c.l.b16 %v274
    %v346 = vunpack.c.l.b16 %v275
    %v347 = vunpack.c.l.b16 %v276
    %v348 = vunpack.c.l.b16 %v277
    %v349 = vunpack.c.l.b16 %v278
    %v350 = vunpack.c.l.b16 %v279
    %v351 = vunpack.c.l.b16 %v280
    %v352 = vunpack.c.l.b16 %v281
    %v353 = vunpack.c.l.b16 %v282
    %v354 = vunpack.c.l.b16 %v283
    %v355 = vunpack.c.l.b16 %v284
    %v356 = vunpack.c.l.b16 %v285
    %v357 = vunpack.c.l.b16 %v286
    %v358 = vunpack.c.l.b16 %v287
    %v359 = vunpack.c.l.b16 %v288
    %v360 = vunpack.c.l.b16 %v289
    %v361 = vpack.c.b16 %v330, %v329
    %v362 = vpack.c.b16 %v332, %v331
    %v363 = vpack.c.b16 %v334, %v333
    %v364 = vpack.c.b16 %v336, %v335
    %v365 = vpack.c.b16 %v338, %v337
    %v366 = vpack.c.b16 %v340, %v339
    %v367 = vpack.c.b16 %v342, %v341
    %v368 = vpack.c.b16 %v344, %v343
    %v369 = vpack.c.b16 %v346, %v345
    %v370 = vpack.c.b16 %v348, %v347
    %v371 = vpack.c.b16 %v350, %v349
    %v372 = vpack.c.b16 %v352, %v351
    %v373 = vpack.c.b16 %v354, %v353
    %v374 = vpack.c.b16 %v356, %v355
    %v375 = vpack.c.b16 %v358, %v357
    %v376 = vpack.c.b16 %v360, %v359
    %393 = vmatprep.subr.bf16.mxu0 0
    %394 = vmatpush1.bf16.msra.mxu0 %v368
    %395 = vmatprep.subr.bf16.mxu0 0
    %396 = vmatpush1.bf16.msra.mxu0 %v367
    %397 = vmatprep.subr.bf16.mxu0 0
    %398 = vmatpush1.bf16.msra.mxu0 %v366
    %399 = vmatprep.subr.bf16.mxu0 0
    %400 = vmatpush1.bf16.msra.mxu0 %v365
    %401 = vmatprep.subr.bf16.mxu0 0
    %402 = vmatpush1.bf16.msra.mxu0 %v364
    %403 = vmatprep.subr.bf16.mxu0 0
    %404 = vmatpush1.bf16.msra.mxu0 %v363
    %405 = vmatprep.subr.bf16.mxu0 0
    %406 = vmatpush1.bf16.msra.mxu0 %v362
    %407 = vmatprep.subr.bf16.mxu0 0
    %408 = vmatpush1.bf16.msra.mxu0 %v361
    %409 = vmatprep.subr.bf16.mxu0 0
    %410 = vmatpush2.bf16.msra.mxu0 %v376
    %411 = vmatprep.subr.bf16.mxu0 0
    %412 = vmatpush2.bf16.msra.mxu0 %v375
    %413 = vmatprep.subr.bf16.mxu0 0
    %414 = vmatpush2.bf16.msra.mxu0 %v374
    %415 = vmatprep.subr.bf16.mxu0 0
    %416 = vmatpush2.bf16.msra.mxu0 %v373
    %417 = vmatprep.subr.bf16.mxu0 0
    %418 = vmatpush2.bf16.msra.mxu0 %v372
    %419 = vmatprep.subr.bf16.mxu0 0
    %420 = vmatpush2.bf16.msra.mxu0 %v371
    %421 = vmatprep.subr.bf16.mxu0 0
    %422 = vmatpush2.bf16.msra.mxu0 %v370
    %423 = vmatprep.subr.bf16.mxu0 0
    %424 = vmatpush2.bf16.msra.mxu0 %v369
    %425 = vmatprep.mubr.bf16.mxu0 %v255
    %426 = vmatmul.mubr.bf16.gmra.mxu0 %v254
    %v427 = vpop.f32.mrf.mxu0
    %v428 = vadd.f32 %v295, %v427
    %v429 = vpop.f32.mrf.mxu0
    %v430 = vpop.f32.mrf.mxu0
    %v431 = vadd.f32 %v295, %v430
    %v432 = vpop.f32.mrf.mxu0
    %433 = vmatprep.mubr.bf16.mxu0 %v257
    %434 = vmatmul.mubr.bf16.gmra.mxu0 %v256
    %v435 = vpop.f32.mrf.mxu0
    %v436 = vadd.f32 %v295, %v435
    %v437 = vpop.f32.mrf.mxu0
    %v438 = vpop.f32.mrf.mxu0
    %v439 = vadd.f32 %v295, %v438
    %v440 = vpop.f32.mrf.mxu0
    %441 = vdwg.mxu0
    %v442 = vadd.f32 %v121, %v428
    %v443 = vadd.f32 %v122, %v431
    %v444 = vadd.f32 %v123, %v436
    %v445 = vadd.f32 %v124, %v439
    %v446 = vsel %vm49, %v442, 0.0
    %447 = vadd.xlane.f32.xlu0 %v446
    %v448 = vpop.xlane.xlu0 %447
    %v449 = vsel %vm49, %v443, 0.0
    %450 = vadd.xlane.f32.xlu0 %v449
    %v451 = vpop.xlane.xlu0 %450
    %v452 = vsel %vm49, %v444, 0.0
    %453 = vadd.xlane.f32.xlu0 %v452
    %v454 = vpop.xlane.xlu0 %453
    %v455 = vsel %vm49, %v445, 0.0
    %456 = vadd.xlane.f32.xlu0 %v455
    %v457 = vpop.xlane.xlu0 %456
    %v458 = vmul.f32 %v448, %v62
    %v459 = vmul.f32 %v451, %v62
    %v460 = vmul.f32 %v454, %v62
    %v461 = vmul.f32 %v457, %v62
    %v462 = vsub.f32 %v442, %v458
    %v463 = vsub.f32 %v443, %v459
    %v464 = vsub.f32 %v444, %v460
    %v465 = vsub.f32 %v445, %v461
    %v466 = vmul.f32 %v462, %v462
    %v467 = vmul.f32 %v463, %v463
    %v468 = vmul.f32 %v464, %v464
    %v469 = vmul.f32 %v465, %v465
    %v470 = vsel %vm49, %v466, 0.0
    %471 = vadd.xlane.f32.xlu0 %v470
    %v472 = vpop.xlane.xlu0 %471
    %v473 = vsel %vm49, %v467, 0.0
    %474 = vadd.xlane.f32.xlu0 %v473
    %v475 = vpop.xlane.xlu0 %474
    %v476 = vsel %vm49, %v468, 0.0
    %477 = vadd.xlane.f32.xlu0 %v476
    %v478 = vpop.xlane.xlu0 %477
    %v479 = vsel %vm49, %v469, 0.0
    %480 = vadd.xlane.f32.xlu0 %v479
    %v481 = vpop.xlane.xlu0 %480
    %v482 = vmul.f32 %v472, %v62
    %v483 = vmul.f32 %v475, %v62
    %v484 = vmul.f32 %v478, %v62
    %v485 = vmul.f32 %v481, %v62
    %v486 = vadd.f32 %v482, 1e-05
    %v487 = vadd.f32 %v483, 1e-05
    %v488 = vadd.f32 %v484, 1e-05
    %v489 = vadd.f32 %v485, 1e-05
    %v490 = vrsqrt.pop %v486
    %v491 = vrsqrt.pop %v487
    %v492 = vrsqrt.pop %v488
    %v493 = vrsqrt.pop %v489
    %v494 = vmul.f32 %v462, %v490
    %v495 = vmul.f32 %v463, %v491
    %v496 = vmul.f32 %v464, %v492
    %v497 = vmul.f32 %v465, %v493
    %v498 = vld [vmem:[%s8] sm:$0x1]
    %v500 = vlaneseq
    %v501 = vshrl.u32 %v500, 7
    %v502 = vsub.s32 0, %v501
    %v503 = vrot.slane %v498, %v502
    %v505 = vmul.f32 %v494, %v503
    %v506 = vmul.f32 %v495, %v503
    %v507 = vmul.f32 %v496, %v503
    %v508 = vmul.f32 %v497, %v503
    %v509 = vld [vmem:[%s9] sm:$0x1]
    %v511 = vlaneseq
    %v512 = vshrl.u32 %v511, 7
    %v513 = vsub.s32 0, %v512
    %v514 = vrot.slane %v509, %v513
    %v516 = vadd.f32 %v505, %v514
    %v517 = vadd.f32 %v506, %v514
    %v518 = vadd.f32 %v507, %v514
    %v519 = vadd.f32 %v508, %v514
    %520 = vst.msk [vmem:[#allocation2] sm:$0xff] %vm49, %v516
    %521 = vst.msk [vmem:[#allocation2 + $0x8] sm:$0xff] %vm49, %v517
    %522 = vst.msk [vmem:[#allocation2 + $0x10] sm:$0xff] %vm49, %v518
    %523 = vst.msk [vmem:[#allocation2 + $0x18] sm:$0xff] %vm49, %v519
    // Predicated region
    $region42: #{encoder_layer_forward.5} parent=1 // pred_check
      _
    $region43: #{encoder_layer_forward.5} parent=1 // pred_check_branch
      %525 = sbr.rel (0) target = $region45
    $region44: #{encoder_layer_forward.5} parent=1 // pred_region
      %s527 = ssub.s32 512, 512
      %528 = vsyncadd [#allocation3], %s527
      %s529 = sshll.u32 [#allocation2], 4
      %s530 = int_to_ptr.vmem [resolvable:$true] %s529
      %535 = dma.vmem_to_hbm [thread:$0]  %s530, 512, %s10, [#allocation3], 128, 128, 8
    $region45: #{encoder_layer_forward.5} parent=1 // pred_fallthru
      _
    // Predicated region
    $region46: #{encoder_layer_forward.5} parent=1 // pred_check
      _
    $region47: #{encoder_layer_forward.5} parent=1 // pred_check_branch
      %537 = sbr.rel (0) target = $region49
    $region48: #{encoder_layer_forward.5} parent=1 // pred_region
      %538 = dma.done [#allocation3], 512
    $region49: #{encoder_layer_forward.5} parent=1 // pred_fallthru
      _
    %539 = vsyncpa [#allocation3], 1

</llo_original>
